<compile_context>
chip_gen: v5e
topology: v5e:2x2
jax: 0.10.0
libtpu: 0.0.40
codegen_flags: <defaults>
</compile_context>

<pallas_src>
import jax
import jax.numpy as jnp
from jax import lax
from jax.experimental import pallas as pl
from jax.experimental.pallas import tpu as pltpu

EPS = 1e-5


def _bn_apply(y, gamma, beta, inv_p, relu):
    """Training-mode BatchNorm over rows (rows = N*H*W), biased variance.

    Fused form: one sum / sum-of-squares reduction, [1,C] scale & shift, one FMA pass.
    """
    s = jnp.sum(y, axis=0, keepdims=True)
    ss = jnp.sum(y * y, axis=0, keepdims=True)
    mean = s * inv_p
    var = ss * inv_p - mean * mean                  # biased variance (training mode)
    scale = gamma * lax.rsqrt(var + EPS)            # rsqrt -> EUP
    shift = beta - mean * scale
    z = y * scale + shift
    return jnp.maximum(z, 0.0) if relu else z


def _make_bottleneck_kernel(n, h, w, use_residual, has_shortcut, p):
    inv_p = 1.0 / float(p)
    bf16 = jnp.bfloat16

    def kernel(*refs):
        if has_shortcut:
            (x_ref, w1_ref, g1_ref, b1_ref, w2_ref, g2_ref, b2_ref,
             w3_ref, g3_ref, b3_ref, ws_ref, gs_ref, bs_ref,
             o_ref, h1p_ref) = refs
        else:
            (x_ref, w1_ref, g1_ref, b1_ref, w2_ref, g2_ref, b2_ref,
             w3_ref, g3_ref, b3_ref, o_ref, h1p_ref) = refs

        mid = w1_ref.shape[1]

        x = x_ref[...]                               # bf16 if has_shortcut else f32
        xb = x if has_shortcut else x.astype(bf16)

        # ---- conv1 (1x1, stride applied outside) + bn1 + relu ------------------
        y1 = jnp.dot(xb, w1_ref[...], preferred_element_type=jnp.float32)
        h1 = _bn_apply(y1, g1_ref[...], b1_ref[...], inv_p, relu=True)   # [P, mid] f32

        # ---- conv2 (dense 3x3, stride 1, pad 1) as one im2col MXU matmul --------
        # bf16 padded scratch: zero ONLY the halo ring, write the interior once.
        h1b = h1.astype(bf16)
        h1p_ref[:, 0:1, :, :] = jnp.zeros((n, 1, w + 2, mid), bf16)
        h1p_ref[:, h + 1:h + 2, :, :] = jnp.zeros((n, 1, w + 2, mid), bf16)
        h1p_ref[:, 1:h + 1, 0:1, :] = jnp.zeros((n, h, 1, mid), bf16)
        h1p_ref[:, 1:h + 1, w + 1:w + 2, :] = jnp.zeros((n, h, 1, mid), bf16)
        h1p_ref[:, 1:h + 1, 1:w + 1, :] = h1b.reshape(n, h, w, mid)

        # Nine shifted windows concatenated along channels -> (P, 9*mid) bf16; the
        # center tap is h1b itself (saves one scratch read). Channel (lane) stays the
        # minor dim of each tap, so the reshapes only merge major dims.
        taps = []
        for ky in range(3):
            for kx in range(3):
                if ky == 1 and kx == 1:
                    taps.append(h1b)
                else:
                    taps.append(
                        h1p_ref[:, ky:ky + h, kx:kx + w, :].reshape(p, mid))
        col = jnp.concatenate(taps, axis=-1)         # (P, 9*mid) bf16, lane-dense K
        y2 = jnp.dot(col, w2_ref[...], preferred_element_type=jnp.float32)
        h2 = _bn_apply(y2, g2_ref[...], b2_ref[...], inv_p, relu=True)   # [P, mid]

        # ---- conv3 (1x1) + bn3, shortcut branch, residual add, final relu -------
        # (conv3 and the shortcut keep separate matmuls: training-mode BN stats are
        #  per-branch, so a K-concat fusion before BN would change the semantics.)
        y3 = jnp.dot(h2.astype(bf16), w3_ref[...], preferred_element_type=jnp.float32)
        out = _bn_apply(y3, g3_ref[...], b3_ref[...], inv_p, relu=False)
        if use_residual:
            if has_shortcut:
                # Shortcut conv bias is a no-op under the training-mode BN that follows
                # it, so it is not added (zero numerical change).
                ys = jnp.dot(xb, ws_ref[...], preferred_element_type=jnp.float32)
                out = out + _bn_apply(ys, gs_ref[...], bs_ref[...], inv_p, relu=False)
            else:
                out = out + x                        # identity path (Cin == Cout, f32)
        o_ref[...] = jnp.maximum(out, 0.0)

    return kernel


def _vmem_budget_bytes(P, Cin, mid, Cout, N, Hs, Ws, has_shortcut):
    bf2, f4 = 2, 4
    x_b = P * Cin * (bf2 if has_shortcut else f4)
    w_b = (Cin * mid + 9 * mid * mid + mid * Cout
           + (Cin * Cout if has_shortcut else 0)) * bf2
    bn_b = 8 * max(mid, Cout) * f4
    out_b = P * Cout * f4
    pad_b = N * (Hs + 2) * (Ws + 2) * mid * bf2
    col_b = P * 9 * mid * bf2
    act_b = 6 * P * max(mid, Cout) * f4              # f32 activation slabs (upper bound)
    footprint = x_b + w_b + bn_b + out_b + pad_b + col_b + act_b
    # 2x head-room, clamped to stay well inside v7x's 64 MiB physical VMEM.
    return int(min(48 * 1024 * 1024, max(16 * 1024 * 1024, 2 * footprint)))


def bottleneck_forward(x_nchw, params, *, stride=1, use_residual=True):
    """Forward of the PyTorch Bottleneck block. Input/output are NCHW float32."""
    N, Cin, H, W = x_nchw.shape
    mid = params["w1"].shape[1]          # planes
    Cout = params["w3"].shape[1]         # planes * expansion
    has_shortcut = params.get("ws") is not None
    if not has_shortcut:
        assert Cin == Cout and stride == 1, "identity residual needs matching shapes"

    bf16, f32 = jnp.bfloat16, jnp.float32

    # NHWC; strided 1x1 conv (conv1 / shortcut) == spatial subsample + 1x1 conv.
    x_nhwc = jnp.transpose(x_nchw, (0, 2, 3, 1))
    xs = x_nhwc[:, ::stride, ::stride, :]
    Hs, Ws = xs.shape[1], xs.shape[2]
    P = N * Hs * Ws
    xs_flat = xs.reshape(P, Cin)
    # Pre-cast x to bf16 when it only feeds matmuls (shortcut case); keep f32 when it is
    # also the identity residual operand.
    x_arg = xs_flat.astype(bf16) if has_shortcut else xs_flat.astype(f32)

    # Pre-cast weights to bf16 (halves DMA bytes, no in-kernel cast passes); pre-stack the
    # 3x3 weight tap-major as (9*mid, mid) for the single stacked-K im2col matmul.
    w1 = params["w1"].astype(bf16)                         # [Cin, mid]
    w2 = params["w2"].reshape(9 * mid, mid).astype(bf16)   # [9*mid, mid], tap-major
    w3 = params["w3"].astype(bf16)                         # [mid, Cout]

    args = [x_arg, w1,
            params["g1"].astype(f32), params["b1"].astype(f32),
            w2, params["g2"].astype(f32), params["b2"].astype(f32),
            w3, params["g3"].astype(f32), params["b3"].astype(f32)]
    if has_shortcut:
        args += [params["ws"].astype(bf16),
                 params["gs"].astype(f32), params["bs"].astype(f32)]
        # params["bsc"] (shortcut conv bias) is intentionally not passed: it is exactly
        # cancelled by the training-mode BN that follows the shortcut conv.

    kernel = _make_bottleneck_kernel(N, Hs, Ws, use_residual, has_shortcut, P)

    flops = 2 * P * (Cin * mid + 9 * mid * mid + mid * Cout
                     + (Cin * Cout if has_shortcut else 0))
    bytes_accessed = sum(int(a.size) * a.dtype.itemsize for a in args) + P * Cout * 4
    cost = pl.CostEstimate(flops=flops, transcendentals=0,
                           bytes_accessed=int(bytes_accessed))

    vmem = pl.BlockSpec(memory_space=pltpu.MemorySpace.VMEM)
    out_flat = pl.pallas_call(
        kernel,
        out_shape=jax.ShapeDtypeStruct((P, Cout), jnp.float32),
        in_specs=[vmem] * len(args),
        out_specs=vmem,
        scratch_shapes=[pltpu.VMEM((N, Hs + 2, Ws + 2, mid), jnp.bfloat16)],
        compiler_params=pltpu.CompilerParams(
            vmem_limit_bytes=_vmem_budget_bytes(P, Cin, mid, Cout, N, Hs, Ws,
                                                has_shortcut)),
        cost_estimate=cost,
    )(*args)

    return jnp.transpose(out_flat.reshape(N, Hs, Ws, Cout), (0, 3, 1, 2))


if __name__ == "__main__":
    # Bottleneck(in_planes=16, planes=32, stride=1, use_residual=True)
    in_planes, planes, stride = 16, 32, 1
    expansion = 4
    Cin = in_planes * expansion           # 64  (conv1 / shortcut input channels)
    mid = planes                          # 32  (bottleneck width)
    Cout = planes * expansion             # 128 (block output channels, lane-dense)
    N, H, W = 2, 8, 8

    key = jax.random.PRNGKey(0)
    ks = jax.random.split(key, 14)
    f32 = jnp.float32

    x = jax.random.normal(ks[0], (N, Cin, H, W), f32)

    params = dict(
        # conv1: torch weight [mid, Cin, 1, 1] stored here as [Cin, mid]
        w1=0.1 * jax.random.normal(ks[1], (Cin, mid), f32),
        g1=1.0 + 0.1 * jax.random.normal(ks[2], (1, mid), f32),
        b1=0.1 * jax.random.normal(ks[3], (1, mid), f32),
        # conv2: torch weight [mid, mid, 3, 3] stored tap-major as [9, mid_in, mid_out]
        w2=0.1 * jax.random.normal(ks[4], (9, mid, mid), f32),
        g2=1.0 + 0.1 * jax.random.normal(ks[5], (1, mid), f32),
        b2=0.1 * jax.random.normal(ks[6], (1, mid), f32),
        # conv3: torch weight [Cout, mid, 1, 1] stored here as [mid, Cout]
        w3=0.1 * jax.random.normal(ks[7], (mid, Cout), f32),
        g3=1.0 + 0.1 * jax.random.normal(ks[8], (1, Cout), f32),
        b3=0.1 * jax.random.normal(ks[9], (1, Cout), f32),
        # shortcut (exists since in_planes != planes): 1x1 conv [Cin, Cout] with bias + BN.
        # (The bias is mathematically cancelled by the training-mode BN and is not used.)
        ws=0.1 * jax.random.normal(ks[10], (Cin, Cout), f32),
        bsc=0.1 * jax.random.normal(ks[11], (1, Cout), f32),
        gs=1.0 + 0.1 * jax.random.normal(ks[12], (1, Cout), f32),
        bs=0.1 * jax.random.normal(ks[13], (1, Cout), f32),
    )

    out = bottleneck_forward(x, params, stride=stride, use_residual=True)
    out = jax.block_until_ready(out)
    assert out.shape == (N, Cout, H // stride, W // stride), out.shape
    assert bool(jnp.all(jnp.isfinite(out)))
    print("KERNEL_OK")
</pallas_src>

<mosaic_0001>
module attributes {stable_mosaic.version = 11 : i64} {
  func.func @kernel(%arg0: memref<128x64xbf16, #tpu.memory_space<vmem>>, %arg1: memref<64x32xbf16, #tpu.memory_space<vmem>>, %arg2: memref<1x32xf32, #tpu.memory_space<vmem>>, %arg3: memref<1x32xf32, #tpu.memory_space<vmem>>, %arg4: memref<288x32xbf16, #tpu.memory_space<vmem>>, %arg5: memref<1x32xf32, #tpu.memory_space<vmem>>, %arg6: memref<1x32xf32, #tpu.memory_space<vmem>>, %arg7: memref<32x128xbf16, #tpu.memory_space<vmem>>, %arg8: memref<1x128xf32, #tpu.memory_space<vmem>>, %arg9: memref<1x128xf32, #tpu.memory_space<vmem>>, %arg10: memref<64x128xbf16, #tpu.memory_space<vmem>>, %arg11: memref<1x128xf32, #tpu.memory_space<vmem>>, %arg12: memref<1x128xf32, #tpu.memory_space<vmem>>, %arg13: memref<128x128xf32, #tpu.memory_space<vmem>>, %arg14: memref<2x10x10x32xbf16, #tpu.memory_space<vmem>>) attributes {dimension_semantics = [], scalar_prefetch = 0 : i64, scratch_operands = 1 : i64, tpu.core_type = #tpu.core_type<tc>} {
    %c0 = arith.constant 0 : index
    %c0_0 = arith.constant 0 : index
    %0 = vector.load %arg0[%c0, %c0_0] : memref<128x64xbf16, #tpu.memory_space<vmem>>, vector<128x64xbf16>
    %c0_1 = arith.constant 0 : index
    %c0_2 = arith.constant 0 : index
    %1 = vector.load %arg1[%c0_1, %c0_2] : memref<64x32xbf16, #tpu.memory_space<vmem>>, vector<64x32xbf16>
    %cst = arith.constant dense<0.000000e+00> : vector<128x32xf32>
    %2 = tpu.matmul %0, %1, %cst {dimension_numbers = #tpu.dot_dimension_numbers<[1], [0], [0], [1], [0, 0, 1, 1], [], []>} : vector<128x64xbf16>, vector<64x32xbf16>, vector<128x32xf32> -> vector<128x32xf32>
    %c0_3 = arith.constant 0 : index
    %c0_4 = arith.constant 0 : index
    %3 = vector.load %arg2[%c0_3, %c0_4] : memref<1x32xf32, #tpu.memory_space<vmem>>, vector<1x32xf32>
    %c0_5 = arith.constant 0 : index
    %c0_6 = arith.constant 0 : index
    %4 = vector.load %arg3[%c0_5, %c0_6] : memref<1x32xf32, #tpu.memory_space<vmem>>, vector<1x32xf32>
    %cst_7 = arith.constant dense<0.000000e+00> : vector<32xf32>
    %5 = vector.multi_reduction <add>, %2, %cst_7 [0] : vector<128x32xf32> to vector<32xf32>
    %6 = vector.shape_cast %5 : vector<32xf32> to vector<1x32xf32>
    %7 = arith.mulf %2, %2 : vector<128x32xf32>
    %cst_8 = arith.constant dense<0.000000e+00> : vector<32xf32>
    %8 = vector.multi_reduction <add>, %7, %cst_8 [0] : vector<128x32xf32> to vector<32xf32>
    %9 = vector.shape_cast %8 : vector<32xf32> to vector<1x32xf32>
    %cst_9 = arith.constant 7.812500e-03 : f32
    %10 = vector.broadcast %cst_9 : f32 to vector<1x32xf32>
    %11 = arith.mulf %6, %10 : vector<1x32xf32>
    %cst_10 = arith.constant 7.812500e-03 : f32
    %12 = vector.broadcast %cst_10 : f32 to vector<1x32xf32>
    %13 = arith.mulf %9, %12 : vector<1x32xf32>
    %14 = arith.mulf %11, %11 : vector<1x32xf32>
    %15 = arith.subf %13, %14 : vector<1x32xf32>
    %cst_11 = arith.constant 9.99999974E-6 : f32
    %16 = vector.broadcast %cst_11 : f32 to vector<1x32xf32>
    %17 = arith.addf %15, %16 : vector<1x32xf32>
    %18 = math.rsqrt %17 : vector<1x32xf32>
    %19 = arith.mulf %3, %18 : vector<1x32xf32>
    %20 = arith.mulf %11, %19 : vector<1x32xf32>
    %21 = arith.subf %4, %20 : vector<1x32xf32>
    %22 = vector.broadcast %19 : vector<1x32xf32> to vector<128x32xf32>
    %23 = arith.mulf %2, %22 : vector<128x32xf32>
    %24 = vector.broadcast %21 : vector<1x32xf32> to vector<128x32xf32>
    %25 = arith.addf %23, %24 : vector<128x32xf32>
    %cst_12 = arith.constant 0.000000e+00 : f32
    %26 = vector.broadcast %cst_12 : f32 to vector<128x32xf32>
    %27 = arith.maximumf %25, %26 : vector<128x32xf32>
    %28 = arith.truncf %27 : vector<128x32xf32> to vector<128x32xbf16>
    %cst_13 = arith.constant 0.000000e+00 : bf16
    %29 = vector.broadcast %cst_13 : bf16 to vector<2x1x10x32xbf16>
    %c0_14 = arith.constant 0 : index
    %c0_15 = arith.constant 0 : index
    %c0_16 = arith.constant 0 : index
    %c0_17 = arith.constant 0 : index
    %30 = vector.load %arg14[%c0_14, %c0_15, %c0_16, %c0_17] : memref<2x10x10x32xbf16, #tpu.memory_space<vmem>>, vector<2x1x10x32xbf16>
    tpu.vector_store %arg14[%c0_14, %c0_15, %c0_16, %c0_17], %29 {strides = array<i32>} : memref<2x10x10x32xbf16, #tpu.memory_space<vmem>>, vector<2x1x10x32xbf16>,
    %cst_18 = arith.constant 0.000000e+00 : bf16
    %31 = vector.broadcast %cst_18 : bf16 to vector<2x1x10x32xbf16>
    %c0_19 = arith.constant 0 : index
    %c9 = arith.constant 9 : index
    %c0_20 = arith.constant 0 : index
    %c0_21 = arith.constant 0 : index
    %32 = vector.load %arg14[%c0_19, %c9, %c0_20, %c0_21] : memref<2x10x10x32xbf16, #tpu.memory_space<vmem>>, vector<2x1x10x32xbf16>
    tpu.vector_store %arg14[%c0_19, %c9, %c0_20, %c0_21], %31 {strides = array<i32>} : memref<2x10x10x32xbf16, #tpu.memory_space<vmem>>, vector<2x1x10x32xbf16>,
    %cst_22 = arith.constant 0.000000e+00 : bf16
    %33 = vector.broadcast %cst_22 : bf16 to vector<2x8x1x32xbf16>
    %c0_23 = arith.constant 0 : index
    %c1 = arith.constant 1 : index
    %c0_24 = arith.constant 0 : index
    %c0_25 = arith.constant 0 : index
    %34 = vector.load %arg14[%c0_23, %c1, %c0_24, %c0_25] : memref<2x10x10x32xbf16, #tpu.memory_space<vmem>>, vector<2x8x1x32xbf16>
    tpu.vector_store %arg14[%c0_23, %c1, %c0_24, %c0_25], %33 {strides = array<i32>} : memref<2x10x10x32xbf16, #tpu.memory_space<vmem>>, vector<2x8x1x32xbf16>,
    %cst_26 = arith.constant 0.000000e+00 : bf16
    %35 = vector.broadcast %cst_26 : bf16 to vector<2x8x1x32xbf16>
    %c0_27 = arith.constant 0 : index
    %c1_28 = arith.constant 1 : index
    %c9_29 = arith.constant 9 : index
    %c0_30 = arith.constant 0 : index
    %36 = vector.load %arg14[%c0_27, %c1_28, %c9_29, %c0_30] : memref<2x10x10x32xbf16, #tpu.memory_space<vmem>>, vector<2x8x1x32xbf16>
    tpu.vector_store %arg14[%c0_27, %c1_28, %c9_29, %c0_30], %35 {strides = array<i32>} : memref<2x10x10x32xbf16, #tpu.memory_space<vmem>>, vector<2x8x1x32xbf16>,
    %37 = vector.shape_cast %28 : vector<128x32xbf16> to vector<2x8x8x32xbf16>
    %c0_31 = arith.constant 0 : index
    %c1_32 = arith.constant 1 : index
    %c1_33 = arith.constant 1 : index
    %c0_34 = arith.constant 0 : index
    %38 = vector.load %arg14[%c0_31, %c1_32, %c1_33, %c0_34] : memref<2x10x10x32xbf16, #tpu.memory_space<vmem>>, vector<2x8x8x32xbf16>
    tpu.vector_store %arg14[%c0_31, %c1_32, %c1_33, %c0_34], %37 {strides = array<i32>} : memref<2x10x10x32xbf16, #tpu.memory_space<vmem>>, vector<2x8x8x32xbf16>,
    %c0_35 = arith.constant 0 : index
    %c0_36 = arith.constant 0 : index
    %c0_37 = arith.constant 0 : index
    %c0_38 = arith.constant 0 : index
    %39 = vector.load %arg14[%c0_35, %c0_36, %c0_37, %c0_38] : memref<2x10x10x32xbf16, #tpu.memory_space<vmem>>, vector<2x8x8x32xbf16>
    %40 = vector.shape_cast %39 : vector<2x8x8x32xbf16> to vector<128x32xbf16>
    %c0_39 = arith.constant 0 : index
    %c0_40 = arith.constant 0 : index
    %c1_41 = arith.constant 1 : index
    %c0_42 = arith.constant 0 : index
    %41 = vector.load %arg14[%c0_39, %c0_40, %c1_41, %c0_42] : memref<2x10x10x32xbf16, #tpu.memory_space<vmem>>, vector<2x8x8x32xbf16>
    %42 = vector.shape_cast %41 : vector<2x8x8x32xbf16> to vector<128x32xbf16>
    %c0_43 = arith.constant 0 : index
    %c0_44 = arith.constant 0 : index
    %c2 = arith.constant 2 : index
    %c0_45 = arith.constant 0 : index
    %43 = vector.load %arg14[%c0_43, %c0_44, %c2, %c0_45] : memref<2x10x10x32xbf16, #tpu.memory_space<vmem>>, vector<2x8x8x32xbf16>
    %44 = vector.shape_cast %43 : vector<2x8x8x32xbf16> to vector<128x32xbf16>
    %c0_46 = arith.constant 0 : index
    %c1_47 = arith.constant 1 : index
    %c0_48 = arith.constant 0 : index
    %c0_49 = arith.constant 0 : index
    %45 = vector.load %arg14[%c0_46, %c1_47, %c0_48, %c0_49] : memref<2x10x10x32xbf16, #tpu.memory_space<vmem>>, vector<2x8x8x32xbf16>
    %46 = vector.shape_cast %45 : vector<2x8x8x32xbf16> to vector<128x32xbf16>
    %c0_50 = arith.constant 0 : index
    %c1_51 = arith.constant 1 : index
    %c2_52 = arith.constant 2 : index
    %c0_53 = arith.constant 0 : index
    %47 = vector.load %arg14[%c0_50, %c1_51, %c2_52, %c0_53] : memref<2x10x10x32xbf16, #tpu.memory_space<vmem>>, vector<2x8x8x32xbf16>
    %48 = vector.shape_cast %47 : vector<2x8x8x32xbf16> to vector<128x32xbf16>
    %c0_54 = arith.constant 0 : index
    %c2_55 = arith.constant 2 : index
    %c0_56 = arith.constant 0 : index
    %c0_57 = arith.constant 0 : index
    %49 = vector.load %arg14[%c0_54, %c2_55, %c0_56, %c0_57] : memref<2x10x10x32xbf16, #tpu.memory_space<vmem>>, vector<2x8x8x32xbf16>
    %50 = vector.shape_cast %49 : vector<2x8x8x32xbf16> to vector<128x32xbf16>
    %c0_58 = arith.constant 0 : index
    %c2_59 = arith.constant 2 : index
    %c1_60 = arith.constant 1 : index
    %c0_61 = arith.constant 0 : index
    %51 = vector.load %arg14[%c0_58, %c2_59, %c1_60, %c0_61] : memref<2x10x10x32xbf16, #tpu.memory_space<vmem>>, vector<2x8x8x32xbf16>
    %52 = vector.shape_cast %51 : vector<2x8x8x32xbf16> to vector<128x32xbf16>
    %c0_62 = arith.constant 0 : index
    %c2_63 = arith.constant 2 : index
    %c2_64 = arith.constant 2 : index
    %c0_65 = arith.constant 0 : index
    %53 = vector.load %arg14[%c0_62, %c2_63, %c2_64, %c0_65] : memref<2x10x10x32xbf16, #tpu.memory_space<vmem>>, vector<2x8x8x32xbf16>
    %54 = vector.shape_cast %53 : vector<2x8x8x32xbf16> to vector<128x32xbf16>
    %55 = tpu.concatenate %40, %42, %44, %46, %28, %48, %50, %52, %54 in 1 : vector<128x32xbf16>, vector<128x32xbf16>, vector<128x32xbf16>, vector<128x32xbf16>, vector<128x32xbf16>, vector<128x32xbf16>, vector<128x32xbf16>, vector<128x32xbf16>, vector<128x32xbf16> -> vector<128x288xbf16>
    %c0_66 = arith.constant 0 : index
    %c0_67 = arith.constant 0 : index
    %56 = vector.load %arg4[%c0_66, %c0_67] : memref<288x32xbf16, #tpu.memory_space<vmem>>, vector<288x32xbf16>
    %cst_68 = arith.constant dense<0.000000e+00> : vector<128x32xf32>
    %57 = tpu.matmul %55, %56, %cst_68 {dimension_numbers = #tpu.dot_dimension_numbers<[1], [0], [0], [1], [0, 0, 1, 1], [], []>} : vector<128x288xbf16>, vector<288x32xbf16>, vector<128x32xf32> -> vector<128x32xf32>
    %c0_69 = arith.constant 0 : index
    %c0_70 = arith.constant 0 : index
    %58 = vector.load %arg5[%c0_69, %c0_70] : memref<1x32xf32, #tpu.memory_space<vmem>>, vector<1x32xf32>
    %c0_71 = arith.constant 0 : index
    %c0_72 = arith.constant 0 : index
    %59 = vector.load %arg6[%c0_71, %c0_72] : memref<1x32xf32, #tpu.memory_space<vmem>>, vector<1x32xf32>
    %cst_73 = arith.constant dense<0.000000e+00> : vector<32xf32>
    %60 = vector.multi_reduction <add>, %57, %cst_73 [0] : vector<128x32xf32> to vector<32xf32>
    %61 = vector.shape_cast %60 : vector<32xf32> to vector<1x32xf32>
    %62 = arith.mulf %57, %57 : vector<128x32xf32>
    %cst_74 = arith.constant dense<0.000000e+00> : vector<32xf32>
    %63 = vector.multi_reduction <add>, %62, %cst_74 [0] : vector<128x32xf32> to vector<32xf32>
    %64 = vector.shape_cast %63 : vector<32xf32> to vector<1x32xf32>
    %cst_75 = arith.constant 7.812500e-03 : f32
    %65 = vector.broadcast %cst_75 : f32 to vector<1x32xf32>
    %66 = arith.mulf %61, %65 : vector<1x32xf32>
    %cst_76 = arith.constant 7.812500e-03 : f32
    %67 = vector.broadcast %cst_76 : f32 to vector<1x32xf32>
    %68 = arith.mulf %64, %67 : vector<1x32xf32>
    %69 = arith.mulf %66, %66 : vector<1x32xf32>
    %70 = arith.subf %68, %69 : vector<1x32xf32>
    %cst_77 = arith.constant 9.99999974E-6 : f32
    %71 = vector.broadcast %cst_77 : f32 to vector<1x32xf32>
    %72 = arith.addf %70, %71 : vector<1x32xf32>
    %73 = math.rsqrt %72 : vector<1x32xf32>
    %74 = arith.mulf %58, %73 : vector<1x32xf32>
    %75 = arith.mulf %66, %74 : vector<1x32xf32>
    %76 = arith.subf %59, %75 : vector<1x32xf32>
    %77 = vector.broadcast %74 : vector<1x32xf32> to vector<128x32xf32>
    %78 = arith.mulf %57, %77 : vector<128x32xf32>
    %79 = vector.broadcast %76 : vector<1x32xf32> to vector<128x32xf32>
    %80 = arith.addf %78, %79 : vector<128x32xf32>
    %cst_78 = arith.constant 0.000000e+00 : f32
    %81 = vector.broadcast %cst_78 : f32 to vector<128x32xf32>
    %82 = arith.maximumf %80, %81 : vector<128x32xf32>
    %83 = arith.truncf %82 : vector<128x32xf32> to vector<128x32xbf16>
    %c0_79 = arith.constant 0 : index
    %c0_80 = arith.constant 0 : index
    %84 = vector.load %arg7[%c0_79, %c0_80] : memref<32x128xbf16, #tpu.memory_space<vmem>>, vector<32x128xbf16>
    %cst_81 = arith.constant dense<0.000000e+00> : vector<128x128xf32>
    %85 = tpu.matmul %83, %84, %cst_81 {dimension_numbers = #tpu.dot_dimension_numbers<[1], [0], [0], [1], [0, 0, 1, 1], [], []>} : vector<128x32xbf16>, vector<32x128xbf16>, vector<128x128xf32> -> vector<128x128xf32>
    %c0_82 = arith.constant 0 : index
    %c0_83 = arith.constant 0 : index
    %86 = vector.load %arg8[%c0_82, %c0_83] : memref<1x128xf32, #tpu.memory_space<vmem>>, vector<1x128xf32>
    %c0_84 = arith.constant 0 : index
    %c0_85 = arith.constant 0 : index
    %87 = vector.load %arg9[%c0_84, %c0_85] : memref<1x128xf32, #tpu.memory_space<vmem>>, vector<1x128xf32>
    %cst_86 = arith.constant dense<0.000000e+00> : vector<128xf32>
    %88 = vector.multi_reduction <add>, %85, %cst_86 [0] : vector<128x128xf32> to vector<128xf32>
    %89 = vector.shape_cast %88 : vector<128xf32> to vector<1x128xf32>
    %90 = arith.mulf %85, %85 : vector<128x128xf32>
    %cst_87 = arith.constant dense<0.000000e+00> : vector<128xf32>
    %91 = vector.multi_reduction <add>, %90, %cst_87 [0] : vector<128x128xf32> to vector<128xf32>
    %92 = vector.shape_cast %91 : vector<128xf32> to vector<1x128xf32>
    %cst_88 = arith.constant 7.812500e-03 : f32
    %93 = vector.broadcast %cst_88 : f32 to vector<1x128xf32>
    %94 = arith.mulf %89, %93 : vector<1x128xf32>
    %cst_89 = arith.constant 7.812500e-03 : f32
    %95 = vector.broadcast %cst_89 : f32 to vector<1x128xf32>
    %96 = arith.mulf %92, %95 : vector<1x128xf32>
    %97 = arith.mulf %94, %94 : vector<1x128xf32>
    %98 = arith.subf %96, %97 : vector<1x128xf32>
    %cst_90 = arith.constant 9.99999974E-6 : f32
    %99 = vector.broadcast %cst_90 : f32 to vector<1x128xf32>
    %100 = arith.addf %98, %99 : vector<1x128xf32>
    %101 = math.rsqrt %100 : vector<1x128xf32>
    %102 = arith.mulf %86, %101 : vector<1x128xf32>
    %103 = arith.mulf %94, %102 : vector<1x128xf32>
    %104 = arith.subf %87, %103 : vector<1x128xf32>
    %105 = vector.broadcast %102 : vector<1x128xf32> to vector<128x128xf32>
    %106 = arith.mulf %85, %105 : vector<128x128xf32>
    %107 = vector.broadcast %104 : vector<1x128xf32> to vector<128x128xf32>
    %108 = arith.addf %106, %107 : vector<128x128xf32>
    %c0_91 = arith.constant 0 : index
    %c0_92 = arith.constant 0 : index
    %109 = vector.load %arg10[%c0_91, %c0_92] : memref<64x128xbf16, #tpu.memory_space<vmem>>, vector<64x128xbf16>
    %cst_93 = arith.constant dense<0.000000e+00> : vector<128x128xf32>
    %110 = tpu.matmul %0, %109, %cst_93 {dimension_numbers = #tpu.dot_dimension_numbers<[1], [0], [0], [1], [0, 0, 1, 1], [], []>} : vector<128x64xbf16>, vector<64x128xbf16>, vector<128x128xf32> -> vector<128x128xf32>
    %c0_94 = arith.constant 0 : index
    %c0_95 = arith.constant 0 : index
    %111 = vector.load %arg11[%c0_94, %c0_95] : memref<1x128xf32, #tpu.memory_space<vmem>>, vector<1x128xf32>
    %c0_96 = arith.constant 0 : index
    %c0_97 = arith.constant 0 : index
    %112 = vector.load %arg12[%c0_96, %c0_97] : memref<1x128xf32, #tpu.memory_space<vmem>>, vector<1x128xf32>
    %cst_98 = arith.constant dense<0.000000e+00> : vector<128xf32>
    %113 = vector.multi_reduction <add>, %110, %cst_98 [0] : vector<128x128xf32> to vector<128xf32>
    %114 = vector.shape_cast %113 : vector<128xf32> to vector<1x128xf32>
    %115 = arith.mulf %110, %110 : vector<128x128xf32>
    %cst_99 = arith.constant dense<0.000000e+00> : vector<128xf32>
    %116 = vector.multi_reduction <add>, %115, %cst_99 [0] : vector<128x128xf32> to vector<128xf32>
    %117 = vector.shape_cast %116 : vector<128xf32> to vector<1x128xf32>
    %cst_100 = arith.constant 7.812500e-03 : f32
    %118 = vector.broadcast %cst_100 : f32 to vector<1x128xf32>
    %119 = arith.mulf %114, %118 : vector<1x128xf32>
    %cst_101 = arith.constant 7.812500e-03 : f32
    %120 = vector.broadcast %cst_101 : f32 to vector<1x128xf32>
    %121 = arith.mulf %117, %120 : vector<1x128xf32>
    %122 = arith.mulf %119, %119 : vector<1x128xf32>
    %123 = arith.subf %121, %122 : vector<1x128xf32>
    %cst_102 = arith.constant 9.99999974E-6 : f32
    %124 = vector.broadcast %cst_102 : f32 to vector<1x128xf32>
    %125 = arith.addf %123, %124 : vector<1x128xf32>
    %126 = math.rsqrt %125 : vector<1x128xf32>
    %127 = arith.mulf %111, %126 : vector<1x128xf32>
    %128 = arith.mulf %119, %127 : vector<1x128xf32>
    %129 = arith.subf %112, %128 : vector<1x128xf32>
    %130 = vector.broadcast %127 : vector<1x128xf32> to vector<128x128xf32>
    %131 = arith.mulf %110, %130 : vector<128x128xf32>
    %132 = vector.broadcast %129 : vector<1x128xf32> to vector<128x128xf32>
    %133 = arith.addf %131, %132 : vector<128x128xf32>
    %134 = arith.addf %108, %133 : vector<128x128xf32>
    %cst_103 = arith.constant 0.000000e+00 : f32
    %135 = vector.broadcast %cst_103 : f32 to vector<128x128xf32>
    %136 = arith.maximumf %134, %135 : vector<128x128xf32>
    %c0_104 = arith.constant 0 : index
    %c0_105 = arith.constant 0 : index
    %137 = vector.load %arg13[%c0_104, %c0_105] : memref<128x128xf32, #tpu.memory_space<vmem>>, vector<128x128xf32>
    tpu.vector_store %arg13[%c0_104, %c0_105], %136 {strides = array<i32>} : memref<128x128xf32, #tpu.memory_space<vmem>>, vector<128x128xf32>,
    return
  }
}

</mosaic_0001>

<llo_original>
// kernel: tpu_custom_call.1
$region0: #{tpu_custom_call.1}
  #allocation0 [shape = 'u32[]', space=smem, size = 0x4, offset = 0x4, fixed_abs, tag = 'smem constant byte address 0x4 - core index']
  #allocation1 [shape = 'u32[72,128]{1,0:T(1,128)}', space=vmem, size = 0x9000, scoped, tag = 'internal scratch']
  #allocation2 [shape = 'bf16[2,10,10,32]{3,2,1,0:T(8,128)(2,1)}', space=vmem, size = 0x14000, scoped, tag = 'scratch operand']
  %s0 = inlined_call_operand.vmem [shape: bf16[128,64], index: 0, kind: input, shape index: {}]
  %s1 = inlined_call_operand.vmem [shape: bf16[64,32], index: 1, kind: input, shape index: {}]
  %s2 = inlined_call_operand.vmem [shape: f32[1,32], index: 2, kind: input, shape index: {}]
  %s3 = inlined_call_operand.vmem [shape: f32[1,32], index: 3, kind: input, shape index: {}]
  %s4 = inlined_call_operand.vmem [shape: bf16[288,32], index: 4, kind: input, shape index: {}]
  %s5 = inlined_call_operand.vmem [shape: f32[1,32], index: 5, kind: input, shape index: {}]
  %s6 = inlined_call_operand.vmem [shape: f32[1,32], index: 6, kind: input, shape index: {}]
  %s7 = inlined_call_operand.vmem [shape: bf16[32,128], index: 7, kind: input, shape index: {}]
  %s8 = inlined_call_operand.vmem [shape: f32[1,128], index: 8, kind: input, shape index: {}]
  %s9 = inlined_call_operand.vmem [shape: f32[1,128], index: 9, kind: input, shape index: {}]
  %s10 = inlined_call_operand.vmem [shape: bf16[64,128], index: 10, kind: input, shape index: {}]
  %s11 = inlined_call_operand.vmem [shape: f32[1,128], index: 11, kind: input, shape index: {}]
  %s12 = inlined_call_operand.vmem [shape: f32[1,128], index: 12, kind: input, shape index: {}]
  %s13 = inlined_call_operand.hbm [shape: f32[128,128], index: 13, kind: output, shape index: {}]
  %s14 = sld [smem:[#allocation0]]
  $region62: #{tpu_custom_call.1} parent=0
    _
  %s16 = ssub.s32 1, %s14
  %s17 = scalar_select 0, %s16, %s14
  $region1: #{tpu_custom_call.1} parent=0
    #allocation3 [shape = 'u8[65536]{0}', space=vmem, size = 0x10000, scoped, tag = 'output window, operand 0, single buffered']
    #allocation4 [shape = 's32[1]{0}', space=sflag, size = 0x4, scoped, tag = 'scoped memory for tpu_custom_call.1']
    %18 = vsyncpa [#allocation4], 0
    // Predicated region
    $region2: #{tpu_custom_call.1} parent=1 // pred_check
      _
    $region3: #{tpu_custom_call.1} parent=1 // pred_check_branch
      %20 = sbr.rel (0) target = $region5
    $region4: #{tpu_custom_call.1} parent=1 // pred_region
      _
    $region5: #{tpu_custom_call.1} parent=1 // pred_fallthru
      _
    // Predicated region
    $region6: #{tpu_custom_call.1} parent=1 // pred_check
      _
    $region7: #{tpu_custom_call.1} parent=1 // pred_check_branch
      %22 = sbr.rel (0) target = $region9
    $region8: #{tpu_custom_call.1} parent=1 // pred_region
      _
    $region9: #{tpu_custom_call.1} parent=1 // pred_fallthru
      _
    // Predicated region
    $region10: #{tpu_custom_call.1} parent=1 // pred_check
      _
    $region11: #{tpu_custom_call.1} parent=1 // pred_check_branch
      %24 = sbr.rel (0) target = $region13
    $region12: #{tpu_custom_call.1} parent=1 // pred_region
      _
    $region13: #{tpu_custom_call.1} parent=1 // pred_fallthru
      _
    // Predicated region
    $region14: #{tpu_custom_call.1} parent=1 // pred_check
      _
    $region15: #{tpu_custom_call.1} parent=1 // pred_check_branch
      %26 = sbr.rel (0) target = $region17
    $region16: #{tpu_custom_call.1} parent=1 // pred_region
      _
    $region17: #{tpu_custom_call.1} parent=1 // pred_fallthru
      _
    // Predicated region
    $region18: #{tpu_custom_call.1} parent=1 // pred_check
      _
    $region19: #{tpu_custom_call.1} parent=1 // pred_check_branch
      %28 = sbr.rel (0) target = $region21
    $region20: #{tpu_custom_call.1} parent=1 // pred_region
      _
    $region21: #{tpu_custom_call.1} parent=1 // pred_fallthru
      _
    // Predicated region
    $region22: #{tpu_custom_call.1} parent=1 // pred_check
      _
    $region23: #{tpu_custom_call.1} parent=1 // pred_check_branch
      %30 = sbr.rel (0) target = $region25
    $region24: #{tpu_custom_call.1} parent=1 // pred_region
      _
    $region25: #{tpu_custom_call.1} parent=1 // pred_fallthru
      _
    // Predicated region
    $region26: #{tpu_custom_call.1} parent=1 // pred_check
      _
    $region27: #{tpu_custom_call.1} parent=1 // pred_check_branch
      %32 = sbr.rel (0) target = $region29
    $region28: #{tpu_custom_call.1} parent=1 // pred_region
      _
    $region29: #{tpu_custom_call.1} parent=1 // pred_fallthru
      _
    // Predicated region
    $region30: #{tpu_custom_call.1} parent=1 // pred_check
      _
    $region31: #{tpu_custom_call.1} parent=1 // pred_check_branch
      %34 = sbr.rel (0) target = $region33
    $region32: #{tpu_custom_call.1} parent=1 // pred_region
      _
    $region33: #{tpu_custom_call.1} parent=1 // pred_fallthru
      _
    // Predicated region
    $region34: #{tpu_custom_call.1} parent=1 // pred_check
      _
    $region35: #{tpu_custom_call.1} parent=1 // pred_check_branch
      %36 = sbr.rel (0) target = $region37
    $region36: #{tpu_custom_call.1} parent=1 // pred_region
      _
    $region37: #{tpu_custom_call.1} parent=1 // pred_fallthru
      _
    // Predicated region
    $region38: #{tpu_custom_call.1} parent=1 // pred_check
      _
    $region39: #{tpu_custom_call.1} parent=1 // pred_check_branch
      %38 = sbr.rel (0) target = $region41
    $region40: #{tpu_custom_call.1} parent=1 // pred_region
      _
    $region41: #{tpu_custom_call.1} parent=1 // pred_fallthru
      _
    // Predicated region
    $region42: #{tpu_custom_call.1} parent=1 // pred_check
      _
    $region43: #{tpu_custom_call.1} parent=1 // pred_check_branch
      %40 = sbr.rel (0) target = $region45
    $region44: #{tpu_custom_call.1} parent=1 // pred_region
      _
    $region45: #{tpu_custom_call.1} parent=1 // pred_fallthru
      _
    // Predicated region
    $region46: #{tpu_custom_call.1} parent=1 // pred_check
      _
    $region47: #{tpu_custom_call.1} parent=1 // pred_check_branch
      %42 = sbr.rel (0) target = $region49
    $region48: #{tpu_custom_call.1} parent=1 // pred_region
      _
    $region49: #{tpu_custom_call.1} parent=1 // pred_fallthru
      _
    // Predicated region
    $region50: #{tpu_custom_call.1} parent=1 // pred_check
      _
    $region51: #{tpu_custom_call.1} parent=1 // pred_check_branch
      %44 = sbr.rel (0) target = $region53
    $region52: #{tpu_custom_call.1} parent=1 // pred_region
      _
    $region53: #{tpu_custom_call.1} parent=1 // pred_fallthru
      _
    %v46 = vld [vmem:[%s0] sm:$0xf]
    %v47 = vld [vmem:[%s0 + $0x4] sm:$0xf]
    %v48 = vld [vmem:[%s0 + $0x8] sm:$0xf]
    %v49 = vld [vmem:[%s0 + $0xc] sm:$0xf]
    %v50 = vld [vmem:[%s0 + $0x10] sm:$0xf]
    %v51 = vld [vmem:[%s0 + $0x14] sm:$0xf]
    %v52 = vld [vmem:[%s0 + $0x18] sm:$0xf]
    %v53 = vld [vmem:[%s0 + $0x1c] sm:$0xf]
    %v54 = vld [vmem:[%s0 + $0x20] sm:$0xf]
    %v55 = vld [vmem:[%s0 + $0x24] sm:$0xf]
    %v56 = vld [vmem:[%s0 + $0x28] sm:$0xf]
    %v57 = vld [vmem:[%s0 + $0x2c] sm:$0xf]
    %v58 = vld [vmem:[%s0 + $0x30] sm:$0xf]
    %v59 = vld [vmem:[%s0 + $0x34] sm:$0xf]
    %v60 = vld [vmem:[%s0 + $0x38] sm:$0xf]
    %v61 = vld [vmem:[%s0 + $0x3c] sm:$0xf]
    %v62 = vld [vmem:[%s1] sm:$0xf]
    %v63 = vld [vmem:[%s1 + $0x4] sm:$0xf]
    %v64 = vld [vmem:[%s1 + $0x8] sm:$0xf]
    %v65 = vld [vmem:[%s1 + $0xc] sm:$0xf]
    %v66 = vld [vmem:[%s1 + $0x10] sm:$0xf]
    %v67 = vld [vmem:[%s1 + $0x14] sm:$0xf]
    %v68 = vld [vmem:[%s1 + $0x18] sm:$0xf]
    %v69 = vld [vmem:[%s1 + $0x1c] sm:$0xf]
    %v86 = vunpack.c.l.b16 %v46
    %v87 = vunpack.c.l.b16 %v47
    %v88 = vunpack.c.l.b16 %v48
    %v89 = vunpack.c.l.b16 %v49
    %v90 = vunpack.c.l.b16 %v50
    %v91 = vunpack.c.l.b16 %v51
    %v92 = vunpack.c.l.b16 %v52
    %v93 = vunpack.c.l.b16 %v53
    %v94 = vunpack.c.l.b16 %v54
    %v95 = vunpack.c.l.b16 %v55
    %v96 = vunpack.c.l.b16 %v56
    %v97 = vunpack.c.l.b16 %v57
    %v98 = vunpack.c.l.b16 %v58
    %v99 = vunpack.c.l.b16 %v59
    %v100 = vunpack.c.l.b16 %v60
    %v101 = vunpack.c.l.b16 %v61
    %v102 = vpack.c.b16 %v87, %v86
    %v103 = vpack.c.b16 %v89, %v88
    %v104 = vpack.c.b16 %v91, %v90
    %v105 = vpack.c.b16 %v93, %v92
    %v106 = vpack.c.b16 %v95, %v94
    %v107 = vpack.c.b16 %v97, %v96
    %v108 = vpack.c.b16 %v99, %v98
    %v109 = vpack.c.b16 %v101, %v100
    %v118 = vunpack.c.l.b16 %v62
    %v119 = vunpack.c.l.b16 %v63
    %v120 = vunpack.c.l.b16 %v64
    %v121 = vunpack.c.l.b16 %v65
    %v122 = vunpack.c.l.b16 %v66
    %v123 = vunpack.c.l.b16 %v67
    %v124 = vunpack.c.l.b16 %v68
    %v125 = vunpack.c.l.b16 %v69
    %v126 = vpack.c.b16 %v119, %v118
    %v127 = vpack.c.b16 %v121, %v120
    %v128 = vpack.c.b16 %v123, %v122
    %v129 = vpack.c.b16 %v125, %v124
    %vm134 = vcmask 523264
    %v136 = vsel %vm134, %v102, 0
    %v139 = vsel %vm134, %v103, 0
    %v142 = vsel %vm134, %v104, 0
    %v145 = vsel %vm134, %v105, 0
    %v148 = vsel %vm134, %v106, 0
    %v151 = vsel %vm134, %v107, 0
    %v154 = vsel %vm134, %v108, 0
    %v157 = vsel %vm134, %v109, 0
    %159 = vmatpush.bf16.msra.mxu0 0
    %160 = vmatpush.bf16.msra.mxu0 0
    %161 = vmatpush.bf16.msra.mxu0 0
    %162 = vmatpush.bf16.msra.mxu0 0
    %163 = vmatpush.bf16.msra.mxu0 %v129
    %164 = vmatpush.bf16.msra.mxu0 %v128
    %165 = vmatpush.bf16.msra.mxu0 %v127
    %166 = vmatpush.bf16.msra.mxu0 %v126
    %167 = vmatmul.bf16.gmra.mxu0 %v136
    %v168 = vpop.f32.mrf.mxu0
    %v169 = vadd.f32 0.0, %v168
    %v170 = vpop.f32.mrf.mxu0
    %v171 = vadd.f32 0.0, %v170
    %172 = vmatmul.bf16.gmra.mxu0 %v139
    %v173 = vpop.f32.mrf.mxu0
    %v174 = vadd.f32 0.0, %v173
    %v175 = vpop.f32.mrf.mxu0
    %v176 = vadd.f32 0.0, %v175
    %177 = vmatmul.bf16.gmra.mxu0 %v142
    %v178 = vpop.f32.mrf.mxu0
    %v179 = vadd.f32 0.0, %v178
    %v180 = vpop.f32.mrf.mxu0
    %v181 = vadd.f32 0.0, %v180
    %182 = vmatmul.bf16.gmra.mxu0 %v145
    %v183 = vpop.f32.mrf.mxu0
    %v184 = vadd.f32 0.0, %v183
    %v185 = vpop.f32.mrf.mxu0
    %v186 = vadd.f32 0.0, %v185
    %187 = vmatmul.bf16.gmra.mxu0 %v148
    %v188 = vpop.f32.mrf.mxu0
    %v189 = vadd.f32 0.0, %v188
    %v190 = vpop.f32.mrf.mxu0
    %v191 = vadd.f32 0.0, %v190
    %192 = vmatmul.bf16.gmra.mxu0 %v151
    %v193 = vpop.f32.mrf.mxu0
    %v194 = vadd.f32 0.0, %v193
    %v195 = vpop.f32.mrf.mxu0
    %v196 = vadd.f32 0.0, %v195
    %197 = vmatmul.bf16.gmra.mxu0 %v154
    %v198 = vpop.f32.mrf.mxu0
    %v199 = vadd.f32 0.0, %v198
    %v200 = vpop.f32.mrf.mxu0
    %v201 = vadd.f32 0.0, %v200
    %202 = vmatmul.bf16.gmra.mxu0 %v157
    %v203 = vpop.f32.mrf.mxu0
    %v204 = vadd.f32 0.0, %v203
    %v205 = vpop.f32.mrf.mxu0
    %v206 = vadd.f32 0.0, %v205
    %207 = vdwg.mxu0
    %v208 = vld [vmem:[%s2] sm:$0x1]
    %v209 = vld [vmem:[%s3] sm:$0x1]
    %vm210 = vcmask 261120
    %v211 = vsel %vm210, %v169, 0.0
    %v212 = vsel %vm210, %v171, 0.0
    %v213 = vadd.f32 %v211, %v212
    %v214 = vsel %vm210, %v174, 0.0
    %v215 = vadd.f32 %v213, %v214
    %v216 = vsel %vm210, %v176, 0.0
    %v217 = vadd.f32 %v215, %v216
    %v218 = vsel %vm210, %v179, 0.0
    %v219 = vadd.f32 %v217, %v218
    %v220 = vsel %vm210, %v181, 0.0
    %v221 = vadd.f32 %v219, %v220
    %v222 = vsel %vm210, %v184, 0.0
    %v223 = vadd.f32 %v221, %v222
    %v224 = vsel %vm210, %v186, 0.0
    %v225 = vadd.f32 %v223, %v224
    %v226 = vsel %vm210, %v189, 0.0
    %v227 = vadd.f32 %v225, %v226
    %v228 = vsel %vm210, %v191, 0.0
    %v229 = vadd.f32 %v227, %v228
    %v230 = vsel %vm210, %v194, 0.0
    %v231 = vadd.f32 %v229, %v230
    %v232 = vsel %vm210, %v196, 0.0
    %v233 = vadd.f32 %v231, %v232
    %v234 = vsel %vm210, %v199, 0.0
    %v235 = vadd.f32 %v233, %v234
    %v236 = vsel %vm210, %v201, 0.0
    %v237 = vadd.f32 %v235, %v236
    %v238 = vsel %vm210, %v204, 0.0
    %v239 = vadd.f32 %v237, %v238
    %v240 = vsel %vm210, %v206, 0.0
    %v241 = vadd.f32 %v239, %v240
    %v242 = vrot.slane %v241, 4
    %v243 = vadd.f32 %v241, %v242
    %v244 = vrot.slane %v243, 2
    %v245 = vadd.f32 %v243, %v244
    %v246 = vrot.slane %v245, 1
    %v247 = vadd.f32 %v245, %v246
    %v248 = vmul.f32 %v169, %v169
    %v249 = vmul.f32 %v171, %v171
    %v250 = vmul.f32 %v174, %v174
    %v251 = vmul.f32 %v176, %v176
    %v252 = vmul.f32 %v179, %v179
    %v253 = vmul.f32 %v181, %v181
    %v254 = vmul.f32 %v184, %v184
    %v255 = vmul.f32 %v186, %v186
    %v256 = vmul.f32 %v189, %v189
    %v257 = vmul.f32 %v191, %v191
    %v258 = vmul.f32 %v194, %v194
    %v259 = vmul.f32 %v196, %v196
    %v260 = vmul.f32 %v199, %v199
    %v261 = vmul.f32 %v201, %v201
    %v262 = vmul.f32 %v204, %v204
    %v263 = vmul.f32 %v206, %v206
    %v264 = vsel %vm210, %v248, 0.0
    %v265 = vsel %vm210, %v249, 0.0
    %v266 = vadd.f32 %v264, %v265
    %v267 = vsel %vm210, %v250, 0.0
    %v268 = vadd.f32 %v266, %v267
    %v269 = vsel %vm210, %v251, 0.0
    %v270 = vadd.f32 %v268, %v269
    %v271 = vsel %vm210, %v252, 0.0
    %v272 = vadd.f32 %v270, %v271
    %v273 = vsel %vm210, %v253, 0.0
    %v274 = vadd.f32 %v272, %v273
    %v275 = vsel %vm210, %v254, 0.0
    %v276 = vadd.f32 %v274, %v275
    %v277 = vsel %vm210, %v255, 0.0
    %v278 = vadd.f32 %v276, %v277
    %v279 = vsel %vm210, %v256, 0.0
    %v280 = vadd.f32 %v278, %v279
    %v281 = vsel %vm210, %v257, 0.0
    %v282 = vadd.f32 %v280, %v281
    %v283 = vsel %vm210, %v258, 0.0
    %v284 = vadd.f32 %v282, %v283
    %v285 = vsel %vm210, %v259, 0.0
    %v286 = vadd.f32 %v284, %v285
    %v287 = vsel %vm210, %v260, 0.0
    %v288 = vadd.f32 %v286, %v287
    %v289 = vsel %vm210, %v261, 0.0
    %v290 = vadd.f32 %v288, %v289
    %v291 = vsel %vm210, %v262, 0.0
    %v292 = vadd.f32 %v290, %v291
    %v293 = vsel %vm210, %v263, 0.0
    %v294 = vadd.f32 %v292, %v293
    %v295 = vrot.slane %v294, 4
    %v296 = vadd.f32 %v294, %v295
    %v297 = vrot.slane %v296, 2
    %v298 = vadd.f32 %v296, %v297
    %v299 = vrot.slane %v298, 1
    %v300 = vadd.f32 %v298, %v299
    %v301 = vmul.f32 %v247, 0.0078125
    %v302 = vmul.f32 %v300, 0.0078125
    %v303 = vmul.f32 %v301, %v301
    %v304 = vsub.f32 %v302, %v303
    %v305 = vadd.f32 %v304, 1e-05
    %v306 = vrsqrt.pop %v305
    %v307 = vmul.f32 %v306, %v305
    %v308 = vmul.f32 %v307, %v306
    %v309 = vmul.f32 0.5, %v308
    %v310 = vsub.f32 1.5, %v309
    %v311 = vmul.f32 %v306, %v310
    %vm312 = vweird.f32 %v305
    %vm313 = vweird.f32 %v306
    %vm314 = vmor %vm312, %vm313
    %v315 = vsel %vm314, %v306, %v311
    %v316 = vmul.f32 %v208, %v315
    %v317 = vmul.f32 %v301, %v316
    %v318 = vsub.f32 %v209, %v317
    %v320 = vperm.slane %v316, 0
    %v322 = vmul.f32 %v169, %v320
    %v323 = vmul.f32 %v171, %v320
    %v324 = vmul.f32 %v174, %v320
    %v325 = vmul.f32 %v176, %v320
    %v326 = vmul.f32 %v179, %v320
    %v327 = vmul.f32 %v181, %v320
    %v328 = vmul.f32 %v184, %v320
    %v329 = vmul.f32 %v186, %v320
    %v330 = vmul.f32 %v189, %v320
    %v331 = vmul.f32 %v191, %v320
    %v332 = vmul.f32 %v194, %v320
    %v333 = vmul.f32 %v196, %v320
    %v334 = vmul.f32 %v199, %v320
    %v335 = vmul.f32 %v201, %v320
    %v336 = vmul.f32 %v204, %v320
    %v337 = vmul.f32 %v206, %v320
    %v339 = vperm.slane %v318, 0
    %v341 = vadd.f32 %v322, %v339
    %v342 = vadd.f32 %v323, %v339
    %v343 = vadd.f32 %v324, %v339
    %v344 = vadd.f32 %v325, %v339
    %v345 = vadd.f32 %v326, %v339
    %v346 = vadd.f32 %v327, %v339
    %v347 = vadd.f32 %v328, %v339
    %v348 = vadd.f32 %v329, %v339
    %v349 = vadd.f32 %v330, %v339
    %v350 = vadd.f32 %v331, %v339
    %v351 = vadd.f32 %v332, %v339
    %v352 = vadd.f32 %v333, %v339
    %v353 = vadd.f32 %v334, %v339
    %v354 = vadd.f32 %v335, %v339
    %v355 = vadd.f32 %v336, %v339
    %v356 = vadd.f32 %v337, %v339
    %v357 = vmax.f32 %v341, 0.0
    %v358 = vmax.f32 %v342, 0.0
    %v359 = vmax.f32 %v343, 0.0
    %v360 = vmax.f32 %v344, 0.0
    %v361 = vmax.f32 %v345, 0.0
    %v362 = vmax.f32 %v346, 0.0
    %v363 = vmax.f32 %v347, 0.0
    %v364 = vmax.f32 %v348, 0.0
    %v365 = vmax.f32 %v349, 0.0
    %v366 = vmax.f32 %v350, 0.0
    %v367 = vmax.f32 %v351, 0.0
    %v368 = vmax.f32 %v352, 0.0
    %v369 = vmax.f32 %v353, 0.0
    %v370 = vmax.f32 %v354, 0.0
    %v371 = vmax.f32 %v355, 0.0
    %v372 = vmax.f32 %v356, 0.0
    %v373 = vpack.c.bf16 %v357, %v357
    %v374 = vpack.c.bf16 %v358, %v358
    %v375 = vpack.c.bf16 %v359, %v359
    %v376 = vpack.c.bf16 %v360, %v360
    %v377 = vpack.c.bf16 %v361, %v361
    %v378 = vpack.c.bf16 %v362, %v362
    %v379 = vpack.c.bf16 %v363, %v363
    %v380 = vpack.c.bf16 %v364, %v364
    %v381 = vpack.c.bf16 %v365, %v365
    %v382 = vpack.c.bf16 %v366, %v366
    %v383 = vpack.c.bf16 %v367, %v367
    %v384 = vpack.c.bf16 %v368, %v368
    %v385 = vpack.c.bf16 %v369, %v369
    %v386 = vpack.c.bf16 %v370, %v370
    %v387 = vpack.c.bf16 %v371, %v371
    %v388 = vpack.c.bf16 %v372, %v372
    %vm389 = vcmask 257024
    %390 = vst.msk [vmem:[#allocation2] sm:$0xf] %vm389, 0
    %vm391 = vcmask 253952
    %392 = vst.msk [vmem:[#allocation2 + $0x4] sm:$0x1] %vm391, 0
    %393 = vst.msk [vmem:[#allocation2 + $0x50] sm:$0xf] %vm389, 0
    %394 = vst.msk [vmem:[#allocation2 + $0x54] sm:$0x1] %vm391, 0
    %s395 = scalar_lea.vmem [#allocation2], 72
    %396 = vst.msk [vmem:[%s395] sm:$0xf] %vm389, 0
    %397 = vst.msk [vmem:[%s395 + $0x4] sm:$0x1] %vm391, 0
    %398 = vst.msk [vmem:[%s395 + $0x50] sm:$0xf] %vm389, 0
    %399 = vst.msk [vmem:[%s395 + $0x54] sm:$0x1] %vm391, 0
    %s400 = scalar_lea.vmem [#allocation2], 8
    %vm401 = vcmask 253952
    %vm402 = vsmask.f32 256
    %vm403 = vmand %vm401, %vm402
    %v404 = vld [vmem:[%s400] sm:$0x1]
    %v405 = vsel %vm403, 0, %v404
    %406 = vst [vmem:[%s400] sm:$0x1] %v405
    %v407 = vld [vmem:[%s400 + $0x8] sm:$0x1]
    %v408 = vsel %vm403, 0, %v407
    %409 = vst [vmem:[%s400 + $0x8] sm:$0x1] %v408
    %v410 = vld [vmem:[%s400 + $0x10] sm:$0x1]
    %v411 = vsel %vm403, 0, %v410
    %412 = vst [vmem:[%s400 + $0x10] sm:$0x1] %v411
    %v413 = vld [vmem:[%s400 + $0x18] sm:$0x1]
    %v414 = vsel %vm403, 0, %v413
    %415 = vst [vmem:[%s400 + $0x18] sm:$0x1] %v414
    %v416 = vld [vmem:[%s400 + $0x20] sm:$0x1]
    %v417 = vsel %vm403, 0, %v416
    %418 = vst [vmem:[%s400 + $0x20] sm:$0x1] %v417
    %v419 = vld [vmem:[%s400 + $0x28] sm:$0x1]
    %v420 = vsel %vm403, 0, %v419
    %421 = vst [vmem:[%s400 + $0x28] sm:$0x1] %v420
    %v422 = vld [vmem:[%s400 + $0x30] sm:$0x1]
    %v423 = vsel %vm403, 0, %v422
    %424 = vst [vmem:[%s400 + $0x30] sm:$0x1] %v423
    %v425 = vld [vmem:[%s400 + $0x38] sm:$0x1]
    %v426 = vsel %vm403, 0, %v425
    %427 = vst [vmem:[%s400 + $0x38] sm:$0x1] %v426
    %v428 = vld [vmem:[%s400 + $0x50] sm:$0x1]
    %v429 = vsel %vm403, 0, %v428
    %430 = vst [vmem:[%s400 + $0x50] sm:$0x1] %v429
    %v431 = vld [vmem:[%s400 + $0x58] sm:$0x1]
    %v432 = vsel %vm403, 0, %v431
    %433 = vst [vmem:[%s400 + $0x58] sm:$0x1] %v432
    %v434 = vld [vmem:[%s400 + $0x60] sm:$0x1]
    %v435 = vsel %vm403, 0, %v434
    %436 = vst [vmem:[%s400 + $0x60] sm:$0x1] %v435
    %v437 = vld [vmem:[%s400 + $0x68] sm:$0x1]
    %v438 = vsel %vm403, 0, %v437
    %439 = vst [vmem:[%s400 + $0x68] sm:$0x1] %v438
    %v440 = vld [vmem:[%s400 + $0x70] sm:$0x1]
    %v441 = vsel %vm403, 0, %v440
    %442 = vst [vmem:[%s400 + $0x70] sm:$0x1] %v441
    %v443 = vld [vmem:[%s400 + $0x78] sm:$0x1]
    %v444 = vsel %vm403, 0, %v443
    %445 = vst [vmem:[%s400 + $0x78] sm:$0x1] %v444
    %v446 = vld [vmem:[%s400 + $0x80] sm:$0x1]
    %v447 = vsel %vm403, 0, %v446
    %448 = vst [vmem:[%s400 + $0x80] sm:$0x1] %v447
    %v449 = vld [vmem:[%s400 + $0x88] sm:$0x1]
    %v450 = vsel %vm403, 0, %v449
    %451 = vst [vmem:[%s400 + $0x88] sm:$0x1] %v450
    %vm452 = vsmask.f32 7938
    %vm453 = vmand %vm401, %vm452
    %v454 = vld [vmem:[%s400 + $0x4] sm:$0x1]
    %v455 = vsel %vm453, 0, %v454
    %456 = vst [vmem:[%s400 + $0x4] sm:$0x1] %v455
    %v457 = vld [vmem:[%s400 + $0xc] sm:$0x1]
    %v458 = vsel %vm453, 0, %v457
    %459 = vst [vmem:[%s400 + $0xc] sm:$0x1] %v458
    %v460 = vld [vmem:[%s400 + $0x14] sm:$0x1]
    %v461 = vsel %vm453, 0, %v460
    %462 = vst [vmem:[%s400 + $0x14] sm:$0x1] %v461
    %v463 = vld [vmem:[%s400 + $0x1c] sm:$0x1]
    %v464 = vsel %vm453, 0, %v463
    %465 = vst [vmem:[%s400 + $0x1c] sm:$0x1] %v464
    %v466 = vld [vmem:[%s400 + $0x24] sm:$0x1]
    %v467 = vsel %vm453, 0, %v466
    %468 = vst [vmem:[%s400 + $0x24] sm:$0x1] %v467
    %v469 = vld [vmem:[%s400 + $0x2c] sm:$0x1]
    %v470 = vsel %vm453, 0, %v469
    %471 = vst [vmem:[%s400 + $0x2c] sm:$0x1] %v470
    %v472 = vld [vmem:[%s400 + $0x34] sm:$0x1]
    %v473 = vsel %vm453, 0, %v472
    %474 = vst [vmem:[%s400 + $0x34] sm:$0x1] %v473
    %v475 = vld [vmem:[%s400 + $0x3c] sm:$0x1]
    %v476 = vsel %vm453, 0, %v475
    %477 = vst [vmem:[%s400 + $0x3c] sm:$0x1] %v476
    %v478 = vld [vmem:[%s400 + $0x54] sm:$0x1]
    %v479 = vsel %vm453, 0, %v478
    %480 = vst [vmem:[%s400 + $0x54] sm:$0x1] %v479
    %v481 = vld [vmem:[%s400 + $0x5c] sm:$0x1]
    %v482 = vsel %vm453, 0, %v481
    %483 = vst [vmem:[%s400 + $0x5c] sm:$0x1] %v482
    %v484 = vld [vmem:[%s400 + $0x64] sm:$0x1]
    %v485 = vsel %vm453, 0, %v484
    %486 = vst [vmem:[%s400 + $0x64] sm:$0x1] %v485
    %v487 = vld [vmem:[%s400 + $0x6c] sm:$0x1]
    %v488 = vsel %vm453, 0, %v487
    %489 = vst [vmem:[%s400 + $0x6c] sm:$0x1] %v488
    %v490 = vld [vmem:[%s400 + $0x74] sm:$0x1]
    %v491 = vsel %vm453, 0, %v490
    %492 = vst [vmem:[%s400 + $0x74] sm:$0x1] %v491
    %v493 = vld [vmem:[%s400 + $0x7c] sm:$0x1]
    %v494 = vsel %vm453, 0, %v493
    %495 = vst [vmem:[%s400 + $0x7c] sm:$0x1] %v494
    %v496 = vld [vmem:[%s400 + $0x84] sm:$0x1]
    %v497 = vsel %vm453, 0, %v496
    %498 = vst [vmem:[%s400 + $0x84] sm:$0x1] %v497
    %v499 = vld [vmem:[%s400 + $0x8c] sm:$0x1]
    %v500 = vsel %vm453, 0, %v499
    %501 = vst [vmem:[%s400 + $0x8c] sm:$0x1] %v500
    %v503 = vshrl.u32 %v373, 16
    %v505 = vrot.slane %v503, 7
    %v506 = vshll.u32 %v373, 16
    %v508 = vor.u32 %v505, %v506
    %v509 = vrot.slane %v505, 4
    %v511 = vshrl.u32 %v374, 16
    %v513 = vrot.slane %v511, 7
    %v514 = vshll.u32 %v374, 16
    %v516 = vor.u32 %v513, %v514
    %v517 = vrot.slane %v513, 4
    %v519 = vshrl.u32 %v375, 16
    %v521 = vrot.slane %v519, 7
    %v522 = vshll.u32 %v375, 16
    %v524 = vor.u32 %v521, %v522
    %v525 = vrot.slane %v521, 4
    %v527 = vshrl.u32 %v376, 16
    %v529 = vrot.slane %v527, 7
    %v530 = vshll.u32 %v376, 16
    %v532 = vor.u32 %v529, %v530
    %v533 = vrot.slane %v529, 4
    %v535 = vshrl.u32 %v377, 16
    %v537 = vrot.slane %v535, 7
    %v538 = vshll.u32 %v377, 16
    %v540 = vor.u32 %v537, %v538
    %v541 = vrot.slane %v537, 4
    %v543 = vshrl.u32 %v378, 16
    %v545 = vrot.slane %v543, 7
    %v546 = vshll.u32 %v378, 16
    %v548 = vor.u32 %v545, %v546
    %v549 = vrot.slane %v545, 4
    %v551 = vshrl.u32 %v379, 16
    %v553 = vrot.slane %v551, 7
    %v554 = vshll.u32 %v379, 16
    %v556 = vor.u32 %v553, %v554
    %v557 = vrot.slane %v553, 4
    %v559 = vshrl.u32 %v380, 16
    %v561 = vrot.slane %v559, 7
    %v562 = vshll.u32 %v380, 16
    %v564 = vor.u32 %v561, %v562
    %v565 = vrot.slane %v561, 4
    %v567 = vshrl.u32 %v381, 16
    %v569 = vrot.slane %v567, 7
    %v570 = vshll.u32 %v381, 16
    %v572 = vor.u32 %v569, %v570
    %v573 = vrot.slane %v569, 4
    %v575 = vshrl.u32 %v382, 16
    %v577 = vrot.slane %v575, 7
    %v578 = vshll.u32 %v382, 16
    %v580 = vor.u32 %v577, %v578
    %v581 = vrot.slane %v577, 4
    %v583 = vshrl.u32 %v383, 16
    %v585 = vrot.slane %v583, 7
    %v586 = vshll.u32 %v383, 16
    %v588 = vor.u32 %v585, %v586
    %v589 = vrot.slane %v585, 4
    %v591 = vshrl.u32 %v384, 16
    %v593 = vrot.slane %v591, 7
    %v594 = vshll.u32 %v384, 16
    %v596 = vor.u32 %v593, %v594
    %v597 = vrot.slane %v593, 4
    %v599 = vshrl.u32 %v385, 16
    %v601 = vrot.slane %v599, 7
    %v602 = vshll.u32 %v385, 16
    %v604 = vor.u32 %v601, %v602
    %v605 = vrot.slane %v601, 4
    %v607 = vshrl.u32 %v386, 16
    %v609 = vrot.slane %v607, 7
    %v610 = vshll.u32 %v386, 16
    %v612 = vor.u32 %v609, %v610
    %v613 = vrot.slane %v609, 4
    %v615 = vshrl.u32 %v387, 16
    %v617 = vrot.slane %v615, 7
    %v618 = vshll.u32 %v387, 16
    %v620 = vor.u32 %v617, %v618
    %v621 = vrot.slane %v617, 4
    %v623 = vshrl.u32 %v388, 16
    %v625 = vrot.slane %v623, 7
    %v626 = vshll.u32 %v388, 16
    %v628 = vor.u32 %v625, %v626
    %v629 = vrot.slane %v625, 4
    %vm662 = vcmask 257024
    %vm663 = vmand %vm662, %vm452
    %v664 = vld [vmem:[%s400] sm:$0xf]
    %v665 = vsel %vm663, %v508, %v664
    %666 = vst [vmem:[%s400] sm:$0xf] %v665
    %v667 = vld [vmem:[%s400 + $0x4] sm:$0x1]
    %v668 = vsel %vm403, %v509, %v667
    %669 = vst [vmem:[%s400 + $0x4] sm:$0x1] %v668
    %v670 = vld [vmem:[%s400 + $0x8] sm:$0xf]
    %v671 = vsel %vm663, %v516, %v670
    %672 = vst [vmem:[%s400 + $0x8] sm:$0xf] %v671
    %v673 = vld [vmem:[%s400 + $0xc] sm:$0x1]
    %v674 = vsel %vm403, %v517, %v673
    %675 = vst [vmem:[%s400 + $0xc] sm:$0x1] %v674
    %v676 = vld [vmem:[%s400 + $0x10] sm:$0xf]
    %v677 = vsel %vm663, %v524, %v676
    %678 = vst [vmem:[%s400 + $0x10] sm:$0xf] %v677
    %v679 = vld [vmem:[%s400 + $0x14] sm:$0x1]
    %v680 = vsel %vm403, %v525, %v679
    %681 = vst [vmem:[%s400 + $0x14] sm:$0x1] %v680
    %v682 = vld [vmem:[%s400 + $0x18] sm:$0xf]
    %v683 = vsel %vm663, %v532, %v682
    %684 = vst [vmem:[%s400 + $0x18] sm:$0xf] %v683
    %v685 = vld [vmem:[%s400 + $0x1c] sm:$0x1]
    %v686 = vsel %vm403, %v533, %v685
    %687 = vst [vmem:[%s400 + $0x1c] sm:$0x1] %v686
    %v688 = vld [vmem:[%s400 + $0x20] sm:$0xf]
    %v689 = vsel %vm663, %v540, %v688
    %690 = vst [vmem:[%s400 + $0x20] sm:$0xf] %v689
    %v691 = vld [vmem:[%s400 + $0x24] sm:$0x1]
    %v692 = vsel %vm403, %v541, %v691
    %693 = vst [vmem:[%s400 + $0x24] sm:$0x1] %v692
    %v694 = vld [vmem:[%s400 + $0x28] sm:$0xf]
    %v695 = vsel %vm663, %v548, %v694
    %696 = vst [vmem:[%s400 + $0x28] sm:$0xf] %v695
    %v697 = vld [vmem:[%s400 + $0x2c] sm:$0x1]
    %v698 = vsel %vm403, %v549, %v697
    %699 = vst [vmem:[%s400 + $0x2c] sm:$0x1] %v698
    %v700 = vld [vmem:[%s400 + $0x30] sm:$0xf]
    %v701 = vsel %vm663, %v556, %v700
    %702 = vst [vmem:[%s400 + $0x30] sm:$0xf] %v701
    %v703 = vld [vmem:[%s400 + $0x34] sm:$0x1]
    %v704 = vsel %vm403, %v557, %v703
    %705 = vst [vmem:[%s400 + $0x34] sm:$0x1] %v704
    %v706 = vld [vmem:[%s400 + $0x38] sm:$0xf]
    %v707 = vsel %vm663, %v564, %v706
    %708 = vst [vmem:[%s400 + $0x38] sm:$0xf] %v707
    %v709 = vld [vmem:[%s400 + $0x3c] sm:$0x1]
    %v710 = vsel %vm403, %v565, %v709
    %711 = vst [vmem:[%s400 + $0x3c] sm:$0x1] %v710
    %v712 = vld [vmem:[%s400 + $0x50] sm:$0xf]
    %v713 = vsel %vm663, %v572, %v712
    %714 = vst [vmem:[%s400 + $0x50] sm:$0xf] %v713
    %v715 = vld [vmem:[%s400 + $0x54] sm:$0x1]
    %v716 = vsel %vm403, %v573, %v715
    %717 = vst [vmem:[%s400 + $0x54] sm:$0x1] %v716
    %v718 = vld [vmem:[%s400 + $0x58] sm:$0xf]
    %v719 = vsel %vm663, %v580, %v718
    %720 = vst [vmem:[%s400 + $0x58] sm:$0xf] %v719
    %v721 = vld [vmem:[%s400 + $0x5c] sm:$0x1]
    %v722 = vsel %vm403, %v581, %v721
    %723 = vst [vmem:[%s400 + $0x5c] sm:$0x1] %v722
    %v724 = vld [vmem:[%s400 + $0x60] sm:$0xf]
    %v725 = vsel %vm663, %v588, %v724
    %726 = vst [vmem:[%s400 + $0x60] sm:$0xf] %v725
    %v727 = vld [vmem:[%s400 + $0x64] sm:$0x1]
    %v728 = vsel %vm403, %v589, %v727
    %729 = vst [vmem:[%s400 + $0x64] sm:$0x1] %v728
    %v730 = vld [vmem:[%s400 + $0x68] sm:$0xf]
    %v731 = vsel %vm663, %v596, %v730
    %732 = vst [vmem:[%s400 + $0x68] sm:$0xf] %v731
    %v733 = vld [vmem:[%s400 + $0x6c] sm:$0x1]
    %v734 = vsel %vm403, %v597, %v733
    %735 = vst [vmem:[%s400 + $0x6c] sm:$0x1] %v734
    %v736 = vld [vmem:[%s400 + $0x70] sm:$0xf]
    %v737 = vsel %vm663, %v604, %v736
    %738 = vst [vmem:[%s400 + $0x70] sm:$0xf] %v737
    %v739 = vld [vmem:[%s400 + $0x74] sm:$0x1]
    %v740 = vsel %vm403, %v605, %v739
    %741 = vst [vmem:[%s400 + $0x74] sm:$0x1] %v740
    %v742 = vld [vmem:[%s400 + $0x78] sm:$0xf]
    %v743 = vsel %vm663, %v612, %v742
    %744 = vst [vmem:[%s400 + $0x78] sm:$0xf] %v743
    %v745 = vld [vmem:[%s400 + $0x7c] sm:$0x1]
    %v746 = vsel %vm403, %v613, %v745
    %747 = vst [vmem:[%s400 + $0x7c] sm:$0x1] %v746
    %v748 = vld [vmem:[%s400 + $0x80] sm:$0xf]
    %v749 = vsel %vm663, %v620, %v748
    %750 = vst [vmem:[%s400 + $0x80] sm:$0xf] %v749
    %v751 = vld [vmem:[%s400 + $0x84] sm:$0x1]
    %v752 = vsel %vm403, %v621, %v751
    %753 = vst [vmem:[%s400 + $0x84] sm:$0x1] %v752
    %v754 = vld [vmem:[%s400 + $0x88] sm:$0xf]
    %v755 = vsel %vm663, %v628, %v754
    %756 = vst [vmem:[%s400 + $0x88] sm:$0xf] %v755
    %v757 = vld [vmem:[%s400 + $0x8c] sm:$0x1]
    %v758 = vsel %vm403, %v629, %v757
    %759 = vst [vmem:[%s400 + $0x8c] sm:$0x1] %v758
    %v760 = vld [vmem:[#allocation2] sm:$0xf]
    %v761 = vld [vmem:[#allocation2 + $0x8] sm:$0xf]
    %v762 = vld [vmem:[#allocation2 + $0x10] sm:$0xf]
    %v763 = vld [vmem:[#allocation2 + $0x18] sm:$0xf]
    %v764 = vld [vmem:[#allocation2 + $0x20] sm:$0xf]
    %v765 = vld [vmem:[#allocation2 + $0x28] sm:$0xf]
    %v766 = vld [vmem:[#allocation2 + $0x30] sm:$0xf]
    %v767 = vld [vmem:[#allocation2 + $0x38] sm:$0xf]
    %v768 = vld [vmem:[#allocation2 + $0x50] sm:$0xf]
    %v769 = vld [vmem:[#allocation2 + $0x58] sm:$0xf]
    %v770 = vld [vmem:[#allocation2 + $0x60] sm:$0xf]
    %v771 = vld [vmem:[#allocation2 + $0x68] sm:$0xf]
    %v772 = vld [vmem:[#allocation2 + $0x70] sm:$0xf]
    %v773 = vld [vmem:[#allocation2 + $0x78] sm:$0xf]
    %v774 = vld [vmem:[#allocation2 + $0x80] sm:$0xf]
    %v775 = vld [vmem:[#allocation2 + $0x88] sm:$0xf]
    %v776 = vld [vmem:[#allocation2 + $0x4] sm:$0x1]
    %v777 = vld [vmem:[#allocation2 + $0xc] sm:$0x1]
    %v778 = vld [vmem:[#allocation2 + $0x14] sm:$0x1]
    %v779 = vld [vmem:[#allocation2 + $0x1c] sm:$0x1]
    %v780 = vld [vmem:[#allocation2 + $0x24] sm:$0x1]
    %v781 = vld [vmem:[#allocation2 + $0x2c] sm:$0x1]
    %v782 = vld [vmem:[#allocation2 + $0x34] sm:$0x1]
    %v783 = vld [vmem:[#allocation2 + $0x3c] sm:$0x1]
    %v784 = vld [vmem:[#allocation2 + $0x54] sm:$0x1]
    %v785 = vld [vmem:[#allocation2 + $0x5c] sm:$0x1]
    %v786 = vld [vmem:[#allocation2 + $0x64] sm:$0x1]
    %v787 = vld [vmem:[#allocation2 + $0x6c] sm:$0x1]
    %v788 = vld [vmem:[#allocation2 + $0x74] sm:$0x1]
    %v789 = vld [vmem:[#allocation2 + $0x7c] sm:$0x1]
    %v790 = vld [vmem:[#allocation2 + $0x84] sm:$0x1]
    %v791 = vld [vmem:[#allocation2 + $0x8c] sm:$0x1]
    %vm792 = vsmask.f32 3328
    %vm793 = vsmask.f32 7440
    %vm794 = vmor %vm792, %vm793
    %v796 = vshrl.u32 %v760, 16
    %v798 = vrot.slane %v796, 4
    %v799 = vshll.u32 %v760, 16
    %v801 = vrot.slane %v799, 5
    %v802 = vor.u32 %v798, %v801
    %v803 = vrot.slane %v802, 4
    %v805 = vshll.u32 %v776, 16
    %v807 = vrot.slane %v805, 5
    %v808 = vsel %vm794, %v803, %v807
    %v810 = vshrl.u32 %v761, 16
    %v812 = vrot.slane %v810, 4
    %v813 = vshll.u32 %v761, 16
    %v815 = vrot.slane %v813, 5
    %v816 = vor.u32 %v812, %v815
    %v817 = vrot.slane %v816, 4
    %v819 = vshll.u32 %v777, 16
    %v821 = vrot.slane %v819, 5
    %v822 = vsel %vm794, %v817, %v821
    %v824 = vshrl.u32 %v762, 16
    %v826 = vrot.slane %v824, 4
    %v827 = vshll.u32 %v762, 16
    %v829 = vrot.slane %v827, 5
    %v830 = vor.u32 %v826, %v829
    %v831 = vrot.slane %v830, 4
    %v833 = vshll.u32 %v778, 16
    %v835 = vrot.slane %v833, 5
    %v836 = vsel %vm794, %v831, %v835
    %v838 = vshrl.u32 %v763, 16
    %v840 = vrot.slane %v838, 4
    %v841 = vshll.u32 %v763, 16
    %v843 = vrot.slane %v841, 5
    %v844 = vor.u32 %v840, %v843
    %v845 = vrot.slane %v844, 4
    %v847 = vshll.u32 %v779, 16
    %v849 = vrot.slane %v847, 5
    %v850 = vsel %vm794, %v845, %v849
    %v852 = vshrl.u32 %v764, 16
    %v854 = vrot.slane %v852, 4
    %v855 = vshll.u32 %v764, 16
    %v857 = vrot.slane %v855, 5
    %v858 = vor.u32 %v854, %v857
    %v859 = vrot.slane %v858, 4
    %v861 = vshll.u32 %v780, 16
    %v863 = vrot.slane %v861, 5
    %v864 = vsel %vm794, %v859, %v863
    %v866 = vshrl.u32 %v765, 16
    %v868 = vrot.slane %v866, 4
    %v869 = vshll.u32 %v765, 16
    %v871 = vrot.slane %v869, 5
    %v872 = vor.u32 %v868, %v871
    %v873 = vrot.slane %v872, 4
    %v875 = vshll.u32 %v781, 16
    %v877 = vrot.slane %v875, 5
    %v878 = vsel %vm794, %v873, %v877
    %v880 = vshrl.u32 %v766, 16
    %v882 = vrot.slane %v880, 4
    %v883 = vshll.u32 %v766, 16
    %v885 = vrot.slane %v883, 5
    %v886 = vor.u32 %v882, %v885
    %v887 = vrot.slane %v886, 4
    %v889 = vshll.u32 %v782, 16
    %v891 = vrot.slane %v889, 5
    %v892 = vsel %vm794, %v887, %v891
    %v894 = vshrl.u32 %v767, 16
    %v896 = vrot.slane %v894, 4
    %v897 = vshll.u32 %v767, 16
    %v899 = vrot.slane %v897, 5
    %v900 = vor.u32 %v896, %v899
    %v901 = vrot.slane %v900, 4
    %v903 = vshll.u32 %v783, 16
    %v905 = vrot.slane %v903, 5
    %v906 = vsel %vm794, %v901, %v905
    %v908 = vshrl.u32 %v768, 16
    %v910 = vrot.slane %v908, 4
    %v911 = vshll.u32 %v768, 16
    %v913 = vrot.slane %v911, 5
    %v914 = vor.u32 %v910, %v913
    %v915 = vrot.slane %v914, 4
    %v917 = vshll.u32 %v784, 16
    %v919 = vrot.slane %v917, 5
    %v920 = vsel %vm794, %v915, %v919
    %v922 = vshrl.u32 %v769, 16
    %v924 = vrot.slane %v922, 4
    %v925 = vshll.u32 %v769, 16
    %v927 = vrot.slane %v925, 5
    %v928 = vor.u32 %v924, %v927
    %v929 = vrot.slane %v928, 4
    %v931 = vshll.u32 %v785, 16
    %v933 = vrot.slane %v931, 5
    %v934 = vsel %vm794, %v929, %v933
    %v936 = vshrl.u32 %v770, 16
    %v938 = vrot.slane %v936, 4
    %v939 = vshll.u32 %v770, 16
    %v941 = vrot.slane %v939, 5
    %v942 = vor.u32 %v938, %v941
    %v943 = vrot.slane %v942, 4
    %v945 = vshll.u32 %v786, 16
    %v947 = vrot.slane %v945, 5
    %v948 = vsel %vm794, %v943, %v947
    %v950 = vshrl.u32 %v771, 16
    %v952 = vrot.slane %v950, 4
    %v953 = vshll.u32 %v771, 16
    %v955 = vrot.slane %v953, 5
    %v956 = vor.u32 %v952, %v955
    %v957 = vrot.slane %v956, 4
    %v959 = vshll.u32 %v787, 16
    %v961 = vrot.slane %v959, 5
    %v962 = vsel %vm794, %v957, %v961
    %v964 = vshrl.u32 %v772, 16
    %v966 = vrot.slane %v964, 4
    %v967 = vshll.u32 %v772, 16
    %v969 = vrot.slane %v967, 5
    %v970 = vor.u32 %v966, %v969
    %v971 = vrot.slane %v970, 4
    %v973 = vshll.u32 %v788, 16
    %v975 = vrot.slane %v973, 5
    %v976 = vsel %vm794, %v971, %v975
    %v978 = vshrl.u32 %v773, 16
    %v980 = vrot.slane %v978, 4
    %v981 = vshll.u32 %v773, 16
    %v983 = vrot.slane %v981, 5
    %v984 = vor.u32 %v980, %v983
    %v985 = vrot.slane %v984, 4
    %v987 = vshll.u32 %v789, 16
    %v989 = vrot.slane %v987, 5
    %v990 = vsel %vm794, %v985, %v989
    %v992 = vshrl.u32 %v774, 16
    %v994 = vrot.slane %v992, 4
    %v995 = vshll.u32 %v774, 16
    %v997 = vrot.slane %v995, 5
    %v998 = vor.u32 %v994, %v997
    %v999 = vrot.slane %v998, 4
    %v1001 = vshll.u32 %v790, 16
    %v1003 = vrot.slane %v1001, 5
    %v1004 = vsel %vm794, %v999, %v1003
    %v1006 = vshrl.u32 %v775, 16
    %v1008 = vrot.slane %v1006, 4
    %v1009 = vshll.u32 %v775, 16
    %v1011 = vrot.slane %v1009, 5
    %v1012 = vor.u32 %v1008, %v1011
    %v1013 = vrot.slane %v1012, 4
    %v1015 = vshll.u32 %v791, 16
    %v1017 = vrot.slane %v1015, 5
    %v1018 = vsel %vm794, %v1013, %v1017
    %v1019 = vld [vmem:[#allocation2] sm:$0xe]
    %v1020 = vld [vmem:[#allocation2 + $0x8] sm:$0xe]
    %v1021 = vld [vmem:[#allocation2 + $0x10] sm:$0xe]
    %v1022 = vld [vmem:[#allocation2 + $0x18] sm:$0xe]
    %v1023 = vld [vmem:[#allocation2 + $0x20] sm:$0xe]
    %v1024 = vld [vmem:[#allocation2 + $0x28] sm:$0xe]
    %v1025 = vld [vmem:[#allocation2 + $0x30] sm:$0xe]
    %v1026 = vld [vmem:[#allocation2 + $0x38] sm:$0xe]
    %v1027 = vld [vmem:[#allocation2 + $0x50] sm:$0xe]
    %v1028 = vld [vmem:[#allocation2 + $0x58] sm:$0xe]
    %v1029 = vld [vmem:[#allocation2 + $0x60] sm:$0xe]
    %v1030 = vld [vmem:[#allocation2 + $0x68] sm:$0xe]
    %v1031 = vld [vmem:[#allocation2 + $0x70] sm:$0xe]
    %v1032 = vld [vmem:[#allocation2 + $0x78] sm:$0xe]
    %v1033 = vld [vmem:[#allocation2 + $0x80] sm:$0xe]
    %v1034 = vld [vmem:[#allocation2 + $0x88] sm:$0xe]
    %vm1067 = vcmask 1042432
    %vm1068 = vcmask 1046532
    %vm1069 = vmor %vm1067, %vm1068
    %v1070 = vrot.slane %v1019, 5
    %v1071 = vrot.slane %v1070, 4
    %v1072 = vrot.slane %v776, 5
    %v1073 = vsel %vm1069, %v1071, %v1072
    %v1074 = vrot.slane %v1020, 5
    %v1075 = vrot.slane %v1074, 4
    %v1076 = vrot.slane %v777, 5
    %v1077 = vsel %vm1069, %v1075, %v1076
    %v1078 = vrot.slane %v1021, 5
    %v1079 = vrot.slane %v1078, 4
    %v1080 = vrot.slane %v778, 5
    %v1081 = vsel %vm1069, %v1079, %v1080
    %v1082 = vrot.slane %v1022, 5
    %v1083 = vrot.slane %v1082, 4
    %v1084 = vrot.slane %v779, 5
    %v1085 = vsel %vm1069, %v1083, %v1084
    %v1086 = vrot.slane %v1023, 5
    %v1087 = vrot.slane %v1086, 4
    %v1088 = vrot.slane %v780, 5
    %v1089 = vsel %vm1069, %v1087, %v1088
    %v1090 = vrot.slane %v1024, 5
    %v1091 = vrot.slane %v1090, 4
    %v1092 = vrot.slane %v781, 5
    %v1093 = vsel %vm1069, %v1091, %v1092
    %v1094 = vrot.slane %v1025, 5
    %v1095 = vrot.slane %v1094, 4
    %v1096 = vrot.slane %v782, 5
    %v1097 = vsel %vm1069, %v1095, %v1096
    %v1098 = vrot.slane %v1026, 5
    %v1099 = vrot.slane %v1098, 4
    %v1100 = vrot.slane %v783, 5
    %v1101 = vsel %vm1069, %v1099, %v1100
    %v1102 = vrot.slane %v1027, 5
    %v1103 = vrot.slane %v1102, 4
    %v1104 = vrot.slane %v784, 5
    %v1105 = vsel %vm1069, %v1103, %v1104
    %v1106 = vrot.slane %v1028, 5
    %v1107 = vrot.slane %v1106, 4
    %v1108 = vrot.slane %v785, 5
    %v1109 = vsel %vm1069, %v1107, %v1108
    %v1110 = vrot.slane %v1029, 5
    %v1111 = vrot.slane %v1110, 4
    %v1112 = vrot.slane %v786, 5
    %v1113 = vsel %vm1069, %v1111, %v1112
    %v1114 = vrot.slane %v1030, 5
    %v1115 = vrot.slane %v1114, 4
    %v1116 = vrot.slane %v787, 5
    %v1117 = vsel %vm1069, %v1115, %v1116
    %v1118 = vrot.slane %v1031, 5
    %v1119 = vrot.slane %v1118, 4
    %v1120 = vrot.slane %v788, 5
    %v1121 = vsel %vm1069, %v1119, %v1120
    %v1122 = vrot.slane %v1032, 5
    %v1123 = vrot.slane %v1122, 4
    %v1124 = vrot.slane %v789, 5
    %v1125 = vsel %vm1069, %v1123, %v1124
    %v1126 = vrot.slane %v1033, 5
    %v1127 = vrot.slane %v1126, 4
    %v1128 = vrot.slane %v790, 5
    %v1129 = vsel %vm1069, %v1127, %v1128
    %v1130 = vrot.slane %v1034, 5
    %v1131 = vrot.slane %v1130, 4
    %v1132 = vrot.slane %v791, 5
    %v1133 = vsel %vm1069, %v1131, %v1132
    %v1134 = vld [vmem:[%s400] sm:$0xf]
    %v1135 = vld [vmem:[%s400 + $0x8] sm:$0xf]
    %v1136 = vld [vmem:[%s400 + $0x10] sm:$0xf]
    %v1137 = vld [vmem:[%s400 + $0x18] sm:$0xf]
    %v1138 = vld [vmem:[%s400 + $0x20] sm:$0xf]
    %v1139 = vld [vmem:[%s400 + $0x28] sm:$0xf]
    %v1140 = vld [vmem:[%s400 + $0x30] sm:$0xf]
    %v1141 = vld [vmem:[%s400 + $0x38] sm:$0xf]
    %v1142 = vld [vmem:[%s400 + $0x50] sm:$0xf]
    %v1143 = vld [vmem:[%s400 + $0x58] sm:$0xf]
    %v1144 = vld [vmem:[%s400 + $0x60] sm:$0xf]
    %v1145 = vld [vmem:[%s400 + $0x68] sm:$0xf]
    %v1146 = vld [vmem:[%s400 + $0x70] sm:$0xf]
    %v1147 = vld [vmem:[%s400 + $0x78] sm:$0xf]
    %v1148 = vld [vmem:[%s400 + $0x80] sm:$0xf]
    %v1149 = vld [vmem:[%s400 + $0x88] sm:$0xf]
    %v1150 = vld [vmem:[%s400] sm:$0xe]
    %v1151 = vld [vmem:[%s400 + $0x4] sm:$0x1]
    %v1152 = vld [vmem:[%s400 + $0x8] sm:$0xe]
    %v1153 = vld [vmem:[%s400 + $0xc] sm:$0x1]
    %v1154 = vld [vmem:[%s400 + $0x10] sm:$0xe]
    %v1155 = vld [vmem:[%s400 + $0x14] sm:$0x1]
    %v1156 = vld [vmem:[%s400 + $0x18] sm:$0xe]
    %v1157 = vld [vmem:[%s400 + $0x1c] sm:$0x1]
    %v1158 = vld [vmem:[%s400 + $0x20] sm:$0xe]
    %v1159 = vld [vmem:[%s400 + $0x24] sm:$0x1]
    %v1160 = vld [vmem:[%s400 + $0x28] sm:$0xe]
    %v1161 = vld [vmem:[%s400 + $0x2c] sm:$0x1]
    %v1162 = vld [vmem:[%s400 + $0x30] sm:$0xe]
    %v1163 = vld [vmem:[%s400 + $0x34] sm:$0x1]
    %v1164 = vld [vmem:[%s400 + $0x38] sm:$0xe]
    %v1165 = vld [vmem:[%s400 + $0x3c] sm:$0x1]
    %v1166 = vld [vmem:[%s400 + $0x50] sm:$0xe]
    %v1167 = vld [vmem:[%s400 + $0x54] sm:$0x1]
    %v1168 = vld [vmem:[%s400 + $0x58] sm:$0xe]
    %v1169 = vld [vmem:[%s400 + $0x5c] sm:$0x1]
    %v1170 = vld [vmem:[%s400 + $0x60] sm:$0xe]
    %v1171 = vld [vmem:[%s400 + $0x64] sm:$0x1]
    %v1172 = vld [vmem:[%s400 + $0x68] sm:$0xe]
    %v1173 = vld [vmem:[%s400 + $0x6c] sm:$0x1]
    %v1174 = vld [vmem:[%s400 + $0x70] sm:$0xe]
    %v1175 = vld [vmem:[%s400 + $0x74] sm:$0x1]
    %v1176 = vld [vmem:[%s400 + $0x78] sm:$0xe]
    %v1177 = vld [vmem:[%s400 + $0x7c] sm:$0x1]
    %v1178 = vld [vmem:[%s400 + $0x80] sm:$0xe]
    %v1179 = vld [vmem:[%s400 + $0x84] sm:$0x1]
    %v1180 = vld [vmem:[%s400 + $0x88] sm:$0xe]
    %v1181 = vld [vmem:[%s400 + $0x8c] sm:$0x1]
    %v1214 = vrot.slane %v1150, 5
    %v1215 = vrot.slane %v1214, 4
    %v1216 = vrot.slane %v1151, 5
    %v1217 = vsel %vm1069, %v1215, %v1216
    %v1218 = vrot.slane %v1152, 5
    %v1219 = vrot.slane %v1218, 4
    %v1220 = vrot.slane %v1153, 5
    %v1221 = vsel %vm1069, %v1219, %v1220
    %v1222 = vrot.slane %v1154, 5
    %v1223 = vrot.slane %v1222, 4
    %v1224 = vrot.slane %v1155, 5
    %v1225 = vsel %vm1069, %v1223, %v1224
    %v1226 = vrot.slane %v1156, 5
    %v1227 = vrot.slane %v1226, 4
    %v1228 = vrot.slane %v1157, 5
    %v1229 = vsel %vm1069, %v1227, %v1228
    %v1230 = vrot.slane %v1158, 5
    %v1231 = vrot.slane %v1230, 4
    %v1232 = vrot.slane %v1159, 5
    %v1233 = vsel %vm1069, %v1231, %v1232
    %v1234 = vrot.slane %v1160, 5
    %v1235 = vrot.slane %v1234, 4
    %v1236 = vrot.slane %v1161, 5
    %v1237 = vsel %vm1069, %v1235, %v1236
    %v1238 = vrot.slane %v1162, 5
    %v1239 = vrot.slane %v1238, 4
    %v1240 = vrot.slane %v1163, 5
    %v1241 = vsel %vm1069, %v1239, %v1240
    %v1242 = vrot.slane %v1164, 5
    %v1243 = vrot.slane %v1242, 4
    %v1244 = vrot.slane %v1165, 5
    %v1245 = vsel %vm1069, %v1243, %v1244
    %v1246 = vrot.slane %v1166, 5
    %v1247 = vrot.slane %v1246, 4
    %v1248 = vrot.slane %v1167, 5
    %v1249 = vsel %vm1069, %v1247, %v1248
    %v1250 = vrot.slane %v1168, 5
    %v1251 = vrot.slane %v1250, 4
    %v1252 = vrot.slane %v1169, 5
    %v1253 = vsel %vm1069, %v1251, %v1252
    %v1254 = vrot.slane %v1170, 5
    %v1255 = vrot.slane %v1254, 4
    %v1256 = vrot.slane %v1171, 5
    %v1257 = vsel %vm1069, %v1255, %v1256
    %v1258 = vrot.slane %v1172, 5
    %v1259 = vrot.slane %v1258, 4
    %v1260 = vrot.slane %v1173, 5
    %v1261 = vsel %vm1069, %v1259, %v1260
    %v1262 = vrot.slane %v1174, 5
    %v1263 = vrot.slane %v1262, 4
    %v1264 = vrot.slane %v1175, 5
    %v1265 = vsel %vm1069, %v1263, %v1264
    %v1266 = vrot.slane %v1176, 5
    %v1267 = vrot.slane %v1266, 4
    %v1268 = vrot.slane %v1177, 5
    %v1269 = vsel %vm1069, %v1267, %v1268
    %v1270 = vrot.slane %v1178, 5
    %v1271 = vrot.slane %v1270, 4
    %v1272 = vrot.slane %v1179, 5
    %v1273 = vsel %vm1069, %v1271, %v1272
    %v1274 = vrot.slane %v1180, 5
    %v1275 = vrot.slane %v1274, 4
    %v1276 = vrot.slane %v1181, 5
    %v1277 = vsel %vm1069, %v1275, %v1276
    %s1278 = scalar_lea.vmem [#allocation2], 16
    %v1279 = vld [vmem:[%s1278] sm:$0xf]
    %v1280 = vld [vmem:[%s1278 + $0x8] sm:$0xf]
    %v1281 = vld [vmem:[%s1278 + $0x10] sm:$0xf]
    %v1282 = vld [vmem:[%s1278 + $0x18] sm:$0xf]
    %v1283 = vld [vmem:[%s1278 + $0x20] sm:$0xf]
    %v1284 = vld [vmem:[%s1278 + $0x28] sm:$0xf]
    %v1285 = vld [vmem:[%s1278 + $0x30] sm:$0xf]
    %v1286 = vld [vmem:[%s1278 + $0x38] sm:$0xf]
    %v1287 = vld [vmem:[%s1278 + $0x50] sm:$0xf]
    %v1288 = vld [vmem:[%s1278 + $0x58] sm:$0xf]
    %v1289 = vld [vmem:[%s1278 + $0x60] sm:$0xf]
    %v1290 = vld [vmem:[%s1278 + $0x68] sm:$0xf]
    %v1291 = vld [vmem:[%s1278 + $0x70] sm:$0xf]
    %v1292 = vld [vmem:[%s1278 + $0x78] sm:$0xf]
    %v1293 = vld [vmem:[%s1278 + $0x80] sm:$0xf]
    %v1294 = vld [vmem:[%s1278 + $0x88] sm:$0xf]
    %v1295 = vld [vmem:[%s1278 + $0x4] sm:$0x1]
    %v1296 = vld [vmem:[%s1278 + $0xc] sm:$0x1]
    %v1297 = vld [vmem:[%s1278 + $0x14] sm:$0x1]
    %v1298 = vld [vmem:[%s1278 + $0x1c] sm:$0x1]
    %v1299 = vld [vmem:[%s1278 + $0x24] sm:$0x1]
    %v1300 = vld [vmem:[%s1278 + $0x2c] sm:$0x1]
    %v1301 = vld [vmem:[%s1278 + $0x34] sm:$0x1]
    %v1302 = vld [vmem:[%s1278 + $0x3c] sm:$0x1]
    %v1303 = vld [vmem:[%s1278 + $0x54] sm:$0x1]
    %v1304 = vld [vmem:[%s1278 + $0x5c] sm:$0x1]
    %v1305 = vld [vmem:[%s1278 + $0x64] sm:$0x1]
    %v1306 = vld [vmem:[%s1278 + $0x6c] sm:$0x1]
    %v1307 = vld [vmem:[%s1278 + $0x74] sm:$0x1]
    %v1308 = vld [vmem:[%s1278 + $0x7c] sm:$0x1]
    %v1309 = vld [vmem:[%s1278 + $0x84] sm:$0x1]
    %v1310 = vld [vmem:[%s1278 + $0x8c] sm:$0x1]
    %v1312 = vshrl.u32 %v1279, 16
    %v1314 = vrot.slane %v1312, 4
    %v1315 = vshll.u32 %v1279, 16
    %v1317 = vrot.slane %v1315, 5
    %v1318 = vor.u32 %v1314, %v1317
    %v1319 = vrot.slane %v1318, 4
    %v1321 = vshll.u32 %v1295, 16
    %v1323 = vrot.slane %v1321, 5
    %v1324 = vsel %vm794, %v1319, %v1323
    %v1326 = vshrl.u32 %v1280, 16
    %v1328 = vrot.slane %v1326, 4
    %v1329 = vshll.u32 %v1280, 16
    %v1331 = vrot.slane %v1329, 5
    %v1332 = vor.u32 %v1328, %v1331
    %v1333 = vrot.slane %v1332, 4
    %v1335 = vshll.u32 %v1296, 16
    %v1337 = vrot.slane %v1335, 5
    %v1338 = vsel %vm794, %v1333, %v1337
    %v1340 = vshrl.u32 %v1281, 16
    %v1342 = vrot.slane %v1340, 4
    %v1343 = vshll.u32 %v1281, 16
    %v1345 = vrot.slane %v1343, 5
    %v1346 = vor.u32 %v1342, %v1345
    %v1347 = vrot.slane %v1346, 4
    %v1349 = vshll.u32 %v1297, 16
    %v1351 = vrot.slane %v1349, 5
    %v1352 = vsel %vm794, %v1347, %v1351
    %v1354 = vshrl.u32 %v1282, 16
    %v1356 = vrot.slane %v1354, 4
    %v1357 = vshll.u32 %v1282, 16
    %v1359 = vrot.slane %v1357, 5
    %v1360 = vor.u32 %v1356, %v1359
    %v1361 = vrot.slane %v1360, 4
    %v1363 = vshll.u32 %v1298, 16
    %v1365 = vrot.slane %v1363, 5
    %v1366 = vsel %vm794, %v1361, %v1365
    %v1368 = vshrl.u32 %v1283, 16
    %v1370 = vrot.slane %v1368, 4
    %v1371 = vshll.u32 %v1283, 16
    %v1373 = vrot.slane %v1371, 5
    %v1374 = vor.u32 %v1370, %v1373
    %v1375 = vrot.slane %v1374, 4
    %v1377 = vshll.u32 %v1299, 16
    %v1379 = vrot.slane %v1377, 5
    %v1380 = vsel %vm794, %v1375, %v1379
    %v1382 = vshrl.u32 %v1284, 16
    %v1384 = vrot.slane %v1382, 4
    %v1385 = vshll.u32 %v1284, 16
    %v1387 = vrot.slane %v1385, 5
    %v1388 = vor.u32 %v1384, %v1387
    %v1389 = vrot.slane %v1388, 4
    %v1391 = vshll.u32 %v1300, 16
    %v1393 = vrot.slane %v1391, 5
    %v1394 = vsel %vm794, %v1389, %v1393
    %v1396 = vshrl.u32 %v1285, 16
    %v1398 = vrot.slane %v1396, 4
    %v1399 = vshll.u32 %v1285, 16
    %v1401 = vrot.slane %v1399, 5
    %v1402 = vor.u32 %v1398, %v1401
    %v1403 = vrot.slane %v1402, 4
    %v1405 = vshll.u32 %v1301, 16
    %v1407 = vrot.slane %v1405, 5
    %v1408 = vsel %vm794, %v1403, %v1407
    %v1410 = vshrl.u32 %v1286, 16
    %v1412 = vrot.slane %v1410, 4
    %v1413 = vshll.u32 %v1286, 16
    %v1415 = vrot.slane %v1413, 5
    %v1416 = vor.u32 %v1412, %v1415
    %v1417 = vrot.slane %v1416, 4
    %v1419 = vshll.u32 %v1302, 16
    %v1421 = vrot.slane %v1419, 5
    %v1422 = vsel %vm794, %v1417, %v1421
    %v1424 = vshrl.u32 %v1287, 16
    %v1426 = vrot.slane %v1424, 4
    %v1427 = vshll.u32 %v1287, 16
    %v1429 = vrot.slane %v1427, 5
    %v1430 = vor.u32 %v1426, %v1429
    %v1431 = vrot.slane %v1430, 4
    %v1433 = vshll.u32 %v1303, 16
    %v1435 = vrot.slane %v1433, 5
    %v1436 = vsel %vm794, %v1431, %v1435
    %v1438 = vshrl.u32 %v1288, 16
    %v1440 = vrot.slane %v1438, 4
    %v1441 = vshll.u32 %v1288, 16
    %v1443 = vrot.slane %v1441, 5
    %v1444 = vor.u32 %v1440, %v1443
    %v1445 = vrot.slane %v1444, 4
    %v1447 = vshll.u32 %v1304, 16
    %v1449 = vrot.slane %v1447, 5
    %v1450 = vsel %vm794, %v1445, %v1449
    %v1452 = vshrl.u32 %v1289, 16
    %v1454 = vrot.slane %v1452, 4
    %v1455 = vshll.u32 %v1289, 16
    %v1457 = vrot.slane %v1455, 5
    %v1458 = vor.u32 %v1454, %v1457
    %v1459 = vrot.slane %v1458, 4
    %v1461 = vshll.u32 %v1305, 16
    %v1463 = vrot.slane %v1461, 5
    %v1464 = vsel %vm794, %v1459, %v1463
    %v1466 = vshrl.u32 %v1290, 16
    %v1468 = vrot.slane %v1466, 4
    %v1469 = vshll.u32 %v1290, 16
    %v1471 = vrot.slane %v1469, 5
    %v1472 = vor.u32 %v1468, %v1471
    %v1473 = vrot.slane %v1472, 4
    %v1475 = vshll.u32 %v1306, 16
    %v1477 = vrot.slane %v1475, 5
    %v1478 = vsel %vm794, %v1473, %v1477
    %v1480 = vshrl.u32 %v1291, 16
    %v1482 = vrot.slane %v1480, 4
    %v1483 = vshll.u32 %v1291, 16
    %v1485 = vrot.slane %v1483, 5
    %v1486 = vor.u32 %v1482, %v1485
    %v1487 = vrot.slane %v1486, 4
    %v1489 = vshll.u32 %v1307, 16
    %v1491 = vrot.slane %v1489, 5
    %v1492 = vsel %vm794, %v1487, %v1491
    %v1494 = vshrl.u32 %v1292, 16
    %v1496 = vrot.slane %v1494, 4
    %v1497 = vshll.u32 %v1292, 16
    %v1499 = vrot.slane %v1497, 5
    %v1500 = vor.u32 %v1496, %v1499
    %v1501 = vrot.slane %v1500, 4
    %v1503 = vshll.u32 %v1308, 16
    %v1505 = vrot.slane %v1503, 5
    %v1506 = vsel %vm794, %v1501, %v1505
    %v1508 = vshrl.u32 %v1293, 16
    %v1510 = vrot.slane %v1508, 4
    %v1511 = vshll.u32 %v1293, 16
    %v1513 = vrot.slane %v1511, 5
    %v1514 = vor.u32 %v1510, %v1513
    %v1515 = vrot.slane %v1514, 4
    %v1517 = vshll.u32 %v1309, 16
    %v1519 = vrot.slane %v1517, 5
    %v1520 = vsel %vm794, %v1515, %v1519
    %v1522 = vshrl.u32 %v1294, 16
    %v1524 = vrot.slane %v1522, 4
    %v1525 = vshll.u32 %v1294, 16
    %v1527 = vrot.slane %v1525, 5
    %v1528 = vor.u32 %v1524, %v1527
    %v1529 = vrot.slane %v1528, 4
    %v1531 = vshll.u32 %v1310, 16
    %v1533 = vrot.slane %v1531, 5
    %v1534 = vsel %vm794, %v1529, %v1533
    %v1535 = vld [vmem:[%s1278] sm:$0xe]
    %v1536 = vld [vmem:[%s1278 + $0x8] sm:$0xe]
    %v1537 = vld [vmem:[%s1278 + $0x10] sm:$0xe]
    %v1538 = vld [vmem:[%s1278 + $0x18] sm:$0xe]
    %v1539 = vld [vmem:[%s1278 + $0x20] sm:$0xe]
    %v1540 = vld [vmem:[%s1278 + $0x28] sm:$0xe]
    %v1541 = vld [vmem:[%s1278 + $0x30] sm:$0xe]
    %v1542 = vld [vmem:[%s1278 + $0x38] sm:$0xe]
    %v1543 = vld [vmem:[%s1278 + $0x50] sm:$0xe]
    %v1544 = vld [vmem:[%s1278 + $0x58] sm:$0xe]
    %v1545 = vld [vmem:[%s1278 + $0x60] sm:$0xe]
    %v1546 = vld [vmem:[%s1278 + $0x68] sm:$0xe]
    %v1547 = vld [vmem:[%s1278 + $0x70] sm:$0xe]
    %v1548 = vld [vmem:[%s1278 + $0x78] sm:$0xe]
    %v1549 = vld [vmem:[%s1278 + $0x80] sm:$0xe]
    %v1550 = vld [vmem:[%s1278 + $0x88] sm:$0xe]
    %v1583 = vrot.slane %v1535, 5
    %v1584 = vrot.slane %v1583, 4
    %v1585 = vrot.slane %v1295, 5
    %v1586 = vsel %vm1069, %v1584, %v1585
    %v1587 = vrot.slane %v1536, 5
    %v1588 = vrot.slane %v1587, 4
    %v1589 = vrot.slane %v1296, 5
    %v1590 = vsel %vm1069, %v1588, %v1589
    %v1591 = vrot.slane %v1537, 5
    %v1592 = vrot.slane %v1591, 4
    %v1593 = vrot.slane %v1297, 5
    %v1594 = vsel %vm1069, %v1592, %v1593
    %v1595 = vrot.slane %v1538, 5
    %v1596 = vrot.slane %v1595, 4
    %v1597 = vrot.slane %v1298, 5
    %v1598 = vsel %vm1069, %v1596, %v1597
    %v1599 = vrot.slane %v1539, 5
    %v1600 = vrot.slane %v1599, 4
    %v1601 = vrot.slane %v1299, 5
    %v1602 = vsel %vm1069, %v1600, %v1601
    %v1603 = vrot.slane %v1540, 5
    %v1604 = vrot.slane %v1603, 4
    %v1605 = vrot.slane %v1300, 5
    %v1606 = vsel %vm1069, %v1604, %v1605
    %v1607 = vrot.slane %v1541, 5
    %v1608 = vrot.slane %v1607, 4
    %v1609 = vrot.slane %v1301, 5
    %v1610 = vsel %vm1069, %v1608, %v1609
    %v1611 = vrot.slane %v1542, 5
    %v1612 = vrot.slane %v1611, 4
    %v1613 = vrot.slane %v1302, 5
    %v1614 = vsel %vm1069, %v1612, %v1613
    %v1615 = vrot.slane %v1543, 5
    %v1616 = vrot.slane %v1615, 4
    %v1617 = vrot.slane %v1303, 5
    %v1618 = vsel %vm1069, %v1616, %v1617
    %v1619 = vrot.slane %v1544, 5
    %v1620 = vrot.slane %v1619, 4
    %v1621 = vrot.slane %v1304, 5
    %v1622 = vsel %vm1069, %v1620, %v1621
    %v1623 = vrot.slane %v1545, 5
    %v1624 = vrot.slane %v1623, 4
    %v1625 = vrot.slane %v1305, 5
    %v1626 = vsel %vm1069, %v1624, %v1625
    %v1627 = vrot.slane %v1546, 5
    %v1628 = vrot.slane %v1627, 4
    %v1629 = vrot.slane %v1306, 5
    %v1630 = vsel %vm1069, %v1628, %v1629
    %v1631 = vrot.slane %v1547, 5
    %v1632 = vrot.slane %v1631, 4
    %v1633 = vrot.slane %v1307, 5
    %v1634 = vsel %vm1069, %v1632, %v1633
    %v1635 = vrot.slane %v1548, 5
    %v1636 = vrot.slane %v1635, 4
    %v1637 = vrot.slane %v1308, 5
    %v1638 = vsel %vm1069, %v1636, %v1637
    %v1639 = vrot.slane %v1549, 5
    %v1640 = vrot.slane %v1639, 4
    %v1641 = vrot.slane %v1309, 5
    %v1642 = vsel %vm1069, %v1640, %v1641
    %v1643 = vrot.slane %v1550, 5
    %v1644 = vrot.slane %v1643, 4
    %v1645 = vrot.slane %v1310, 5
    %v1646 = vsel %vm1069, %v1644, %v1645
    %v1663 = vunpack.c.l.b16 %v760
    %v1664 = vunpack.c.l.b16 %v761
    %v1665 = vunpack.c.l.b16 %v762
    %v1666 = vunpack.c.l.b16 %v763
    %v1667 = vunpack.c.l.b16 %v764
    %v1668 = vunpack.c.l.b16 %v765
    %v1669 = vunpack.c.l.b16 %v766
    %v1670 = vunpack.c.l.b16 %v767
    %v1671 = vunpack.c.l.b16 %v768
    %v1672 = vunpack.c.l.b16 %v769
    %v1673 = vunpack.c.l.b16 %v770
    %v1674 = vunpack.c.l.b16 %v771
    %v1675 = vunpack.c.l.b16 %v772
    %v1676 = vunpack.c.l.b16 %v773
    %v1677 = vunpack.c.l.b16 %v774
    %v1678 = vunpack.c.l.b16 %v775
    %v1679 = vpack.c.b16 %v1664, %v1663
    %v1680 = vpack.c.b16 %v1666, %v1665
    %v1681 = vpack.c.b16 %v1668, %v1667
    %v1682 = vpack.c.b16 %v1670, %v1669
    %v1683 = vpack.c.b16 %v1672, %v1671
    %v1684 = vpack.c.b16 %v1674, %v1673
    %v1685 = vpack.c.b16 %v1676, %v1675
    %v1686 = vpack.c.b16 %v1678, %v1677
    %v1687 = vunpack.c.l.b16 %v808
    %v1688 = vunpack.c.l.b16 %v822
    %v1689 = vunpack.c.l.b16 %v836
    %v1690 = vunpack.c.l.b16 %v850
    %v1691 = vunpack.c.l.b16 %v864
    %v1692 = vunpack.c.l.b16 %v878
    %v1693 = vunpack.c.l.b16 %v892
    %v1694 = vunpack.c.l.b16 %v906
    %v1695 = vunpack.c.l.b16 %v920
    %v1696 = vunpack.c.l.b16 %v934
    %v1697 = vunpack.c.l.b16 %v948
    %v1698 = vunpack.c.l.b16 %v962
    %v1699 = vunpack.c.l.b16 %v976
    %v1700 = vunpack.c.l.b16 %v990
    %v1701 = vunpack.c.l.b16 %v1004
    %v1702 = vunpack.c.l.b16 %v1018
    %v1703 = vpack.c.b16 %v1688, %v1687
    %v1704 = vpack.c.b16 %v1690, %v1689
    %v1705 = vpack.c.b16 %v1692, %v1691
    %v1706 = vpack.c.b16 %v1694, %v1693
    %v1707 = vpack.c.b16 %v1696, %v1695
    %v1708 = vpack.c.b16 %v1698, %v1697
    %v1709 = vpack.c.b16 %v1700, %v1699
    %v1710 = vpack.c.b16 %v1702, %v1701
    %1711 = vrot.lane.b32.xlu0 %v1703, 32
    %v1712 = vpop.permute.xlu0 %1711
    %1713 = vrot.lane.b32.xlu0 %v1704, 32
    %v1714 = vpop.permute.xlu0 %1713
    %1715 = vrot.lane.b32.xlu0 %v1705, 32
    %v1716 = vpop.permute.xlu0 %1715
    %1717 = vrot.lane.b32.xlu0 %v1706, 32
    %v1718 = vpop.permute.xlu0 %1717
    %1719 = vrot.lane.b32.xlu0 %v1707, 32
    %v1720 = vpop.permute.xlu0 %1719
    %1721 = vrot.lane.b32.xlu0 %v1708, 32
    %v1722 = vpop.permute.xlu0 %1721
    %1723 = vrot.lane.b32.xlu0 %v1709, 32
    %v1724 = vpop.permute.xlu0 %1723
    %1725 = vrot.lane.b32.xlu0 %v1710, 32
    %v1726 = vpop.permute.xlu0 %1725
    %v1727 = vunpack.c.l.b16 %v1073
    %v1728 = vunpack.c.l.b16 %v1077
    %v1729 = vunpack.c.l.b16 %v1081
    %v1730 = vunpack.c.l.b16 %v1085
    %v1731 = vunpack.c.l.b16 %v1089
    %v1732 = vunpack.c.l.b16 %v1093
    %v1733 = vunpack.c.l.b16 %v1097
    %v1734 = vunpack.c.l.b16 %v1101
    %v1735 = vunpack.c.l.b16 %v1105
    %v1736 = vunpack.c.l.b16 %v1109
    %v1737 = vunpack.c.l.b16 %v1113
    %v1738 = vunpack.c.l.b16 %v1117
    %v1739 = vunpack.c.l.b16 %v1121
    %v1740 = vunpack.c.l.b16 %v1125
    %v1741 = vunpack.c.l.b16 %v1129
    %v1742 = vunpack.c.l.b16 %v1133
    %v1743 = vpack.c.b16 %v1728, %v1727
    %v1744 = vpack.c.b16 %v1730, %v1729
    %v1745 = vpack.c.b16 %v1732, %v1731
    %v1746 = vpack.c.b16 %v1734, %v1733
    %v1747 = vpack.c.b16 %v1736, %v1735
    %v1748 = vpack.c.b16 %v1738, %v1737
    %v1749 = vpack.c.b16 %v1740, %v1739
    %v1750 = vpack.c.b16 %v1742, %v1741
    %1751 = vrot.lane.b32.xlu0 %v1743, 64
    %v1752 = vpop.permute.xlu0 %1751
    %1753 = vrot.lane.b32.xlu0 %v1744, 64
    %v1754 = vpop.permute.xlu0 %1753
    %1755 = vrot.lane.b32.xlu0 %v1745, 64
    %v1756 = vpop.permute.xlu0 %1755
    %1757 = vrot.lane.b32.xlu0 %v1746, 64
    %v1758 = vpop.permute.xlu0 %1757
    %1759 = vrot.lane.b32.xlu0 %v1747, 64
    %v1760 = vpop.permute.xlu0 %1759
    %1761 = vrot.lane.b32.xlu0 %v1748, 64
    %v1762 = vpop.permute.xlu0 %1761
    %1763 = vrot.lane.b32.xlu0 %v1749, 64
    %v1764 = vpop.permute.xlu0 %1763
    %1765 = vrot.lane.b32.xlu0 %v1750, 64
    %v1766 = vpop.permute.xlu0 %1765
    %v1783 = vunpack.c.l.b16 %v1134
    %v1784 = vunpack.c.l.b16 %v1135
    %v1785 = vunpack.c.l.b16 %v1136
    %v1786 = vunpack.c.l.b16 %v1137
    %v1787 = vunpack.c.l.b16 %v1138
    %v1788 = vunpack.c.l.b16 %v1139
    %v1789 = vunpack.c.l.b16 %v1140
    %v1790 = vunpack.c.l.b16 %v1141
    %v1791 = vunpack.c.l.b16 %v1142
    %v1792 = vunpack.c.l.b16 %v1143
    %v1793 = vunpack.c.l.b16 %v1144
    %v1794 = vunpack.c.l.b16 %v1145
    %v1795 = vunpack.c.l.b16 %v1146
    %v1796 = vunpack.c.l.b16 %v1147
    %v1797 = vunpack.c.l.b16 %v1148
    %v1798 = vunpack.c.l.b16 %v1149
    %v1799 = vpack.c.b16 %v1784, %v1783
    %v1800 = vpack.c.b16 %v1786, %v1785
    %v1801 = vpack.c.b16 %v1788, %v1787
    %v1802 = vpack.c.b16 %v1790, %v1789
    %v1803 = vpack.c.b16 %v1792, %v1791
    %v1804 = vpack.c.b16 %v1794, %v1793
    %v1805 = vpack.c.b16 %v1796, %v1795
    %v1806 = vpack.c.b16 %v1798, %v1797
    %1807 = vrot.lane.b32.xlu0 %v1799, 96
    %v1808 = vpop.permute.xlu0 %1807
    %1809 = vrot.lane.b32.xlu0 %v1800, 96
    %v1810 = vpop.permute.xlu0 %1809
    %1811 = vrot.lane.b32.xlu0 %v1801, 96
    %v1812 = vpop.permute.xlu0 %1811
    %1813 = vrot.lane.b32.xlu0 %v1802, 96
    %v1814 = vpop.permute.xlu0 %1813
    %1815 = vrot.lane.b32.xlu0 %v1803, 96
    %v1816 = vpop.permute.xlu0 %1815
    %1817 = vrot.lane.b32.xlu0 %v1804, 96
    %v1818 = vpop.permute.xlu0 %1817
    %1819 = vrot.lane.b32.xlu0 %v1805, 96
    %v1820 = vpop.permute.xlu0 %1819
    %1821 = vrot.lane.b32.xlu0 %v1806, 96
    %v1822 = vpop.permute.xlu0 %1821
    %v1839 = vunpack.c.l.b16 %v373
    %v1840 = vunpack.c.l.b16 %v374
    %v1841 = vunpack.c.l.b16 %v375
    %v1842 = vunpack.c.l.b16 %v376
    %v1843 = vunpack.c.l.b16 %v377
    %v1844 = vunpack.c.l.b16 %v378
    %v1845 = vunpack.c.l.b16 %v379
    %v1846 = vunpack.c.l.b16 %v380
    %v1847 = vunpack.c.l.b16 %v381
    %v1848 = vunpack.c.l.b16 %v382
    %v1849 = vunpack.c.l.b16 %v383
    %v1850 = vunpack.c.l.b16 %v384
    %v1851 = vunpack.c.l.b16 %v385
    %v1852 = vunpack.c.l.b16 %v386
    %v1853 = vunpack.c.l.b16 %v387
    %v1854 = vunpack.c.l.b16 %v388
    %v1855 = vpack.c.b16 %v1840, %v1839
    %v1856 = vpack.c.b16 %v1842, %v1841
    %v1857 = vpack.c.b16 %v1844, %v1843
    %v1858 = vpack.c.b16 %v1846, %v1845
    %v1859 = vpack.c.b16 %v1848, %v1847
    %v1860 = vpack.c.b16 %v1850, %v1849
    %v1861 = vpack.c.b16 %v1852, %v1851
    %v1862 = vpack.c.b16 %v1854, %v1853
    %v1863 = vunpack.c.l.b16 %v1217
    %v1864 = vunpack.c.l.b16 %v1221
    %v1865 = vunpack.c.l.b16 %v1225
    %v1866 = vunpack.c.l.b16 %v1229
    %v1867 = vunpack.c.l.b16 %v1233
    %v1868 = vunpack.c.l.b16 %v1237
    %v1869 = vunpack.c.l.b16 %v1241
    %v1870 = vunpack.c.l.b16 %v1245
    %v1871 = vunpack.c.l.b16 %v1249
    %v1872 = vunpack.c.l.b16 %v1253
    %v1873 = vunpack.c.l.b16 %v1257
    %v1874 = vunpack.c.l.b16 %v1261
    %v1875 = vunpack.c.l.b16 %v1265
    %v1876 = vunpack.c.l.b16 %v1269
    %v1877 = vunpack.c.l.b16 %v1273
    %v1878 = vunpack.c.l.b16 %v1277
    %v1879 = vpack.c.b16 %v1864, %v1863
    %v1880 = vpack.c.b16 %v1866, %v1865
    %v1881 = vpack.c.b16 %v1868, %v1867
    %v1882 = vpack.c.b16 %v1870, %v1869
    %v1883 = vpack.c.b16 %v1872, %v1871
    %v1884 = vpack.c.b16 %v1874, %v1873
    %v1885 = vpack.c.b16 %v1876, %v1875
    %v1886 = vpack.c.b16 %v1878, %v1877
    %1887 = vrot.lane.b32.xlu0 %v1879, 32
    %v1888 = vpop.permute.xlu0 %1887
    %1889 = vrot.lane.b32.xlu0 %v1880, 32
    %v1890 = vpop.permute.xlu0 %1889
    %1891 = vrot.lane.b32.xlu0 %v1881, 32
    %v1892 = vpop.permute.xlu0 %1891
    %1893 = vrot.lane.b32.xlu0 %v1882, 32
    %v1894 = vpop.permute.xlu0 %1893
    %1895 = vrot.lane.b32.xlu0 %v1883, 32
    %v1896 = vpop.permute.xlu0 %1895
    %1897 = vrot.lane.b32.xlu0 %v1884, 32
    %v1898 = vpop.permute.xlu0 %1897
    %1899 = vrot.lane.b32.xlu0 %v1885, 32
    %v1900 = vpop.permute.xlu0 %1899
    %1901 = vrot.lane.b32.xlu0 %v1886, 32
    %v1902 = vpop.permute.xlu0 %1901
    %v1919 = vunpack.c.l.b16 %v1279
    %v1920 = vunpack.c.l.b16 %v1280
    %v1921 = vunpack.c.l.b16 %v1281
    %v1922 = vunpack.c.l.b16 %v1282
    %v1923 = vunpack.c.l.b16 %v1283
    %v1924 = vunpack.c.l.b16 %v1284
    %v1925 = vunpack.c.l.b16 %v1285
    %v1926 = vunpack.c.l.b16 %v1286
    %v1927 = vunpack.c.l.b16 %v1287
    %v1928 = vunpack.c.l.b16 %v1288
    %v1929 = vunpack.c.l.b16 %v1289
    %v1930 = vunpack.c.l.b16 %v1290
    %v1931 = vunpack.c.l.b16 %v1291
    %v1932 = vunpack.c.l.b16 %v1292
    %v1933 = vunpack.c.l.b16 %v1293
    %v1934 = vunpack.c.l.b16 %v1294
    %v1935 = vpack.c.b16 %v1920, %v1919
    %v1936 = vpack.c.b16 %v1922, %v1921
    %v1937 = vpack.c.b16 %v1924, %v1923
    %v1938 = vpack.c.b16 %v1926, %v1925
    %v1939 = vpack.c.b16 %v1928, %v1927
    %v1940 = vpack.c.b16 %v1930, %v1929
    %v1941 = vpack.c.b16 %v1932, %v1931
    %v1942 = vpack.c.b16 %v1934, %v1933
    %1943 = vrot.lane.b32.xlu0 %v1935, 64
    %v1944 = vpop.permute.xlu0 %1943
    %1945 = vrot.lane.b32.xlu0 %v1936, 64
    %v1946 = vpop.permute.xlu0 %1945
    %1947 = vrot.lane.b32.xlu0 %v1937, 64
    %v1948 = vpop.permute.xlu0 %1947
    %1949 = vrot.lane.b32.xlu0 %v1938, 64
    %v1950 = vpop.permute.xlu0 %1949
    %1951 = vrot.lane.b32.xlu0 %v1939, 64
    %v1952 = vpop.permute.xlu0 %1951
    %1953 = vrot.lane.b32.xlu0 %v1940, 64
    %v1954 = vpop.permute.xlu0 %1953
    %1955 = vrot.lane.b32.xlu0 %v1941, 64
    %v1956 = vpop.permute.xlu0 %1955
    %1957 = vrot.lane.b32.xlu0 %v1942, 64
    %v1958 = vpop.permute.xlu0 %1957
    %v1959 = vunpack.c.l.b16 %v1324
    %v1960 = vunpack.c.l.b16 %v1338
    %v1961 = vunpack.c.l.b16 %v1352
    %v1962 = vunpack.c.l.b16 %v1366
    %v1963 = vunpack.c.l.b16 %v1380
    %v1964 = vunpack.c.l.b16 %v1394
    %v1965 = vunpack.c.l.b16 %v1408
    %v1966 = vunpack.c.l.b16 %v1422
    %v1967 = vunpack.c.l.b16 %v1436
    %v1968 = vunpack.c.l.b16 %v1450
    %v1969 = vunpack.c.l.b16 %v1464
    %v1970 = vunpack.c.l.b16 %v1478
    %v1971 = vunpack.c.l.b16 %v1492
    %v1972 = vunpack.c.l.b16 %v1506
    %v1973 = vunpack.c.l.b16 %v1520
    %v1974 = vunpack.c.l.b16 %v1534
    %v1975 = vpack.c.b16 %v1960, %v1959
    %v1976 = vpack.c.b16 %v1962, %v1961
    %v1977 = vpack.c.b16 %v1964, %v1963
    %v1978 = vpack.c.b16 %v1966, %v1965
    %v1979 = vpack.c.b16 %v1968, %v1967
    %v1980 = vpack.c.b16 %v1970, %v1969
    %v1981 = vpack.c.b16 %v1972, %v1971
    %v1982 = vpack.c.b16 %v1974, %v1973
    %1983 = vrot.lane.b32.xlu0 %v1975, 96
    %v1984 = vpop.permute.xlu0 %1983
    %1985 = vrot.lane.b32.xlu0 %v1976, 96
    %v1986 = vpop.permute.xlu0 %1985
    %1987 = vrot.lane.b32.xlu0 %v1977, 96
    %v1988 = vpop.permute.xlu0 %1987
    %1989 = vrot.lane.b32.xlu0 %v1978, 96
    %v1990 = vpop.permute.xlu0 %1989
    %1991 = vrot.lane.b32.xlu0 %v1979, 96
    %v1992 = vpop.permute.xlu0 %1991
    %1993 = vrot.lane.b32.xlu0 %v1980, 96
    %v1994 = vpop.permute.xlu0 %1993
    %1995 = vrot.lane.b32.xlu0 %v1981, 96
    %v1996 = vpop.permute.xlu0 %1995
    %1997 = vrot.lane.b32.xlu0 %v1982, 96
    %v1998 = vpop.permute.xlu0 %1997
    %v1999 = vunpack.c.l.b16 %v1586
    %v2000 = vunpack.c.l.b16 %v1590
    %v2001 = vunpack.c.l.b16 %v1594
    %v2002 = vunpack.c.l.b16 %v1598
    %v2003 = vunpack.c.l.b16 %v1602
    %v2004 = vunpack.c.l.b16 %v1606
    %v2005 = vunpack.c.l.b16 %v1610
    %v2006 = vunpack.c.l.b16 %v1614
    %v2007 = vunpack.c.l.b16 %v1618
    %v2008 = vunpack.c.l.b16 %v1622
    %v2009 = vunpack.c.l.b16 %v1626
    %v2010 = vunpack.c.l.b16 %v1630
    %v2011 = vunpack.c.l.b16 %v1634
    %v2012 = vunpack.c.l.b16 %v1638
    %v2013 = vunpack.c.l.b16 %v1642
    %v2014 = vunpack.c.l.b16 %v1646
    %v2015 = vpack.c.b16 %v2000, %v1999
    %v2016 = vpack.c.b16 %v2002, %v2001
    %v2017 = vpack.c.b16 %v2004, %v2003
    %v2018 = vpack.c.b16 %v2006, %v2005
    %v2019 = vpack.c.b16 %v2008, %v2007
    %v2020 = vpack.c.b16 %v2010, %v2009
    %v2021 = vpack.c.b16 %v2012, %v2011
    %v2022 = vpack.c.b16 %v2014, %v2013
    %v2025 = vsel %vm210, %v1679, %v1712
    %v2028 = vsel %vm210, %v1680, %v1714
    %v2031 = vsel %vm210, %v1681, %v1716
    %v2034 = vsel %vm210, %v1682, %v1718
    %v2037 = vsel %vm210, %v1683, %v1720
    %v2040 = vsel %vm210, %v1684, %v1722
    %v2043 = vsel %vm210, %v1685, %v1724
    %v2046 = vsel %vm210, %v1686, %v1726
    %v2048 = vsel %vm134, %v2025, %v1752
    %v2050 = vsel %vm134, %v2028, %v1754
    %v2052 = vsel %vm134, %v2031, %v1756
    %v2054 = vsel %vm134, %v2034, %v1758
    %v2056 = vsel %vm134, %v2037, %v1760
    %v2058 = vsel %vm134, %v2040, %v1762
    %v2060 = vsel %vm134, %v2043, %v1764
    %v2062 = vsel %vm134, %v2046, %v1766
    %vm2063 = vcmask 785408
    %v2065 = vsel %vm2063, %v2048, %v1808
    %v2068 = vsel %vm2063, %v2050, %v1810
    %v2071 = vsel %vm2063, %v2052, %v1812
    %v2074 = vsel %vm2063, %v2054, %v1814
    %v2077 = vsel %vm2063, %v2056, %v1816
    %v2080 = vsel %vm2063, %v2058, %v1818
    %v2083 = vsel %vm2063, %v2060, %v1820
    %v2086 = vsel %vm2063, %v2062, %v1822
    %v2090 = vsel %vm210, %v1855, %v1888
    %v2093 = vsel %vm210, %v1856, %v1890
    %v2096 = vsel %vm210, %v1857, %v1892
    %v2099 = vsel %vm210, %v1858, %v1894
    %v2102 = vsel %vm210, %v1859, %v1896
    %v2105 = vsel %vm210, %v1860, %v1898
    %v2108 = vsel %vm210, %v1861, %v1900
    %v2111 = vsel %vm210, %v1862, %v1902
    %v2113 = vsel %vm134, %v2090, %v1944
    %v2115 = vsel %vm134, %v2093, %v1946
    %v2117 = vsel %vm134, %v2096, %v1948
    %v2119 = vsel %vm134, %v2099, %v1950
    %v2121 = vsel %vm134, %v2102, %v1952
    %v2123 = vsel %vm134, %v2105, %v1954
    %v2125 = vsel %vm134, %v2108, %v1956
    %v2127 = vsel %vm134, %v2111, %v1958
    %v2129 = vsel %vm2063, %v2113, %v1984
    %v2132 = vsel %vm2063, %v2115, %v1986
    %v2135 = vsel %vm2063, %v2117, %v1988
    %v2138 = vsel %vm2063, %v2119, %v1990
    %v2141 = vsel %vm2063, %v2121, %v1992
    %v2144 = vsel %vm2063, %v2123, %v1994
    %v2147 = vsel %vm2063, %v2125, %v1996
    %v2150 = vsel %vm2063, %v2127, %v1998
    %v2152 = vld [vmem:[%s4] sm:$0xf]
    %v2153 = vld [vmem:[%s4 + $0x4] sm:$0xf]
    %v2154 = vld [vmem:[%s4 + $0x8] sm:$0xf]
    %v2155 = vld [vmem:[%s4 + $0xc] sm:$0xf]
    %v2156 = vld [vmem:[%s4 + $0x10] sm:$0xf]
    %v2157 = vld [vmem:[%s4 + $0x14] sm:$0xf]
    %v2158 = vld [vmem:[%s4 + $0x18] sm:$0xf]
    %v2159 = vld [vmem:[%s4 + $0x1c] sm:$0xf]
    %v2160 = vld [vmem:[%s4 + $0x20] sm:$0xf]
    %v2161 = vld [vmem:[%s4 + $0x24] sm:$0xf]
    %v2162 = vld [vmem:[%s4 + $0x28] sm:$0xf]
    %v2163 = vld [vmem:[%s4 + $0x2c] sm:$0xf]
    %v2164 = vld [vmem:[%s4 + $0x30] sm:$0xf]
    %v2165 = vld [vmem:[%s4 + $0x34] sm:$0xf]
    %v2166 = vld [vmem:[%s4 + $0x38] sm:$0xf]
    %v2167 = vld [vmem:[%s4 + $0x3c] sm:$0xf]
    %v2168 = vld [vmem:[%s4 + $0x40] sm:$0xf]
    %v2169 = vld [vmem:[%s4 + $0x44] sm:$0xf]
    %v2170 = vld [vmem:[%s4 + $0x48] sm:$0xf]
    %v2171 = vld [vmem:[%s4 + $0x4c] sm:$0xf]
    %v2172 = vld [vmem:[%s4 + $0x50] sm:$0xf]
    %v2173 = vld [vmem:[%s4 + $0x54] sm:$0xf]
    %v2174 = vld [vmem:[%s4 + $0x58] sm:$0xf]
    %v2175 = vld [vmem:[%s4 + $0x5c] sm:$0xf]
    %v2176 = vld [vmem:[%s4 + $0x60] sm:$0xf]
    %v2177 = vld [vmem:[%s4 + $0x64] sm:$0xf]
    %v2178 = vld [vmem:[%s4 + $0x68] sm:$0xf]
    %v2179 = vld [vmem:[%s4 + $0x6c] sm:$0xf]
    %v2180 = vld [vmem:[%s4 + $0x70] sm:$0xf]
    %v2181 = vld [vmem:[%s4 + $0x74] sm:$0xf]
    %v2182 = vld [vmem:[%s4 + $0x78] sm:$0xf]
    %v2183 = vld [vmem:[%s4 + $0x7c] sm:$0xf]
    %v2184 = vld [vmem:[%s4 + $0x80] sm:$0xf]
    %v2185 = vld [vmem:[%s4 + $0x84] sm:$0xf]
    %v2186 = vld [vmem:[%s4 + $0x88] sm:$0xf]
    %v2187 = vld [vmem:[%s4 + $0x8c] sm:$0xf]
    %v2224 = vunpack.c.l.b16 %v2152
    %v2225 = vunpack.c.l.b16 %v2153
    %v2226 = vunpack.c.l.b16 %v2154
    %v2227 = vunpack.c.l.b16 %v2155
    %v2228 = vunpack.c.l.b16 %v2156
    %v2229 = vunpack.c.l.b16 %v2157
    %v2230 = vunpack.c.l.b16 %v2158
    %v2231 = vunpack.c.l.b16 %v2159
    %v2232 = vunpack.c.l.b16 %v2160
    %v2233 = vunpack.c.l.b16 %v2161
    %v2234 = vunpack.c.l.b16 %v2162
    %v2235 = vunpack.c.l.b16 %v2163
    %v2236 = vunpack.c.l.b16 %v2164
    %v2237 = vunpack.c.l.b16 %v2165
    %v2238 = vunpack.c.l.b16 %v2166
    %v2239 = vunpack.c.l.b16 %v2167
    %v2240 = vunpack.c.l.b16 %v2168
    %v2241 = vunpack.c.l.b16 %v2169
    %v2242 = vunpack.c.l.b16 %v2170
    %v2243 = vunpack.c.l.b16 %v2171
    %v2244 = vunpack.c.l.b16 %v2172
    %v2245 = vunpack.c.l.b16 %v2173
    %v2246 = vunpack.c.l.b16 %v2174
    %v2247 = vunpack.c.l.b16 %v2175
    %v2248 = vunpack.c.l.b16 %v2176
    %v2249 = vunpack.c.l.b16 %v2177
    %v2250 = vunpack.c.l.b16 %v2178
    %v2251 = vunpack.c.l.b16 %v2179
    %v2252 = vunpack.c.l.b16 %v2180
    %v2253 = vunpack.c.l.b16 %v2181
    %v2254 = vunpack.c.l.b16 %v2182
    %v2255 = vunpack.c.l.b16 %v2183
    %v2256 = vunpack.c.l.b16 %v2184
    %v2257 = vunpack.c.l.b16 %v2185
    %v2258 = vunpack.c.l.b16 %v2186
    %v2259 = vunpack.c.l.b16 %v2187
    %v2260 = vpack.c.b16 %v2225, %v2224
    %v2261 = vpack.c.b16 %v2227, %v2226
    %v2262 = vpack.c.b16 %v2229, %v2228
    %v2263 = vpack.c.b16 %v2231, %v2230
    %v2264 = vpack.c.b16 %v2233, %v2232
    %v2265 = vpack.c.b16 %v2235, %v2234
    %v2266 = vpack.c.b16 %v2237, %v2236
    %v2267 = vpack.c.b16 %v2239, %v2238
    %v2268 = vpack.c.b16 %v2241, %v2240
    %v2269 = vpack.c.b16 %v2243, %v2242
    %v2270 = vpack.c.b16 %v2245, %v2244
    %v2271 = vpack.c.b16 %v2247, %v2246
    %v2272 = vpack.c.b16 %v2249, %v2248
    %v2273 = vpack.c.b16 %v2251, %v2250
    %v2274 = vpack.c.b16 %v2253, %v2252
    %v2275 = vpack.c.b16 %v2255, %v2254
    %v2276 = vpack.c.b16 %v2257, %v2256
    %v2277 = vpack.c.b16 %v2259, %v2258
    %v2297 = vsel %vm210, %v2015, 0
    %v2300 = vsel %vm210, %v2016, 0
    %v2303 = vsel %vm210, %v2017, 0
    %v2306 = vsel %vm210, %v2018, 0
    %v2309 = vsel %vm210, %v2019, 0
    %v2312 = vsel %vm210, %v2020, 0
    %v2315 = vsel %vm210, %v2021, 0
    %v2318 = vsel %vm210, %v2022, 0
    %2320 = vmatpush.bf16.msra.mxu0 %v2267
    %2321 = vmatpush.bf16.msra.mxu0 %v2266
    %2322 = vmatpush.bf16.msra.mxu0 %v2265
    %2323 = vmatpush.bf16.msra.mxu0 %v2264
    %2324 = vmatpush.bf16.msra.mxu0 %v2263
    %2325 = vmatpush.bf16.msra.mxu0 %v2262
    %2326 = vmatpush.bf16.msra.mxu0 %v2261
    %2327 = vmatpush.bf16.msra.mxu0 %v2260
    %2328 = vmatmul.bf16.gmra.mxu0 %v2065
    %v2329 = vpop.f32.mrf.mxu0
    %v2330 = vadd.f32 0.0, %v2329
    %v2331 = vpop.f32.mrf.mxu0
    %v2332 = vadd.f32 0.0, %v2331
    %2333 = vmatmul.bf16.gmra.mxu0 %v2068
    %v2334 = vpop.f32.mrf.mxu0
    %v2335 = vadd.f32 0.0, %v2334
    %v2336 = vpop.f32.mrf.mxu0
    %v2337 = vadd.f32 0.0, %v2336
    %2338 = vmatmul.bf16.gmra.mxu0 %v2071
    %v2339 = vpop.f32.mrf.mxu0
    %v2340 = vadd.f32 0.0, %v2339
    %v2341 = vpop.f32.mrf.mxu0
    %v2342 = vadd.f32 0.0, %v2341
    %2343 = vmatmul.bf16.gmra.mxu0 %v2074
    %v2344 = vpop.f32.mrf.mxu0
    %v2345 = vadd.f32 0.0, %v2344
    %v2346 = vpop.f32.mrf.mxu0
    %v2347 = vadd.f32 0.0, %v2346
    %2348 = vmatmul.bf16.gmra.mxu0 %v2077
    %v2349 = vpop.f32.mrf.mxu0
    %v2350 = vadd.f32 0.0, %v2349
    %v2351 = vpop.f32.mrf.mxu0
    %v2352 = vadd.f32 0.0, %v2351
    %2353 = vmatmul.bf16.gmra.mxu0 %v2080
    %v2354 = vpop.f32.mrf.mxu0
    %v2355 = vadd.f32 0.0, %v2354
    %v2356 = vpop.f32.mrf.mxu0
    %v2357 = vadd.f32 0.0, %v2356
    %2358 = vmatmul.bf16.gmra.mxu0 %v2083
    %v2359 = vpop.f32.mrf.mxu0
    %v2360 = vadd.f32 0.0, %v2359
    %v2361 = vpop.f32.mrf.mxu0
    %v2362 = vadd.f32 0.0, %v2361
    %2363 = vmatmul.bf16.gmra.mxu0 %v2086
    %v2364 = vpop.f32.mrf.mxu0
    %v2365 = vadd.f32 0.0, %v2364
    %v2366 = vpop.f32.mrf.mxu0
    %v2367 = vadd.f32 0.0, %v2366
    %2368 = vdwg.mxu0
    %2369 = vmatpush.bf16.msra.mxu0 %v2275
    %2370 = vmatpush.bf16.msra.mxu0 %v2274
    %2371 = vmatpush.bf16.msra.mxu0 %v2273
    %2372 = vmatpush.bf16.msra.mxu0 %v2272
    %2373 = vmatpush.bf16.msra.mxu0 %v2271
    %2374 = vmatpush.bf16.msra.mxu0 %v2270
    %2375 = vmatpush.bf16.msra.mxu0 %v2269
    %2376 = vmatpush.bf16.msra.mxu0 %v2268
    %2377 = vmatmul.bf16.gmra.mxu0 %v2129
    %v2378 = vpop.f32.mrf.mxu0
    %v2379 = vadd.f32 %v2330, %v2378
    %v2380 = vpop.f32.mrf.mxu0
    %v2381 = vadd.f32 %v2332, %v2380
    %2382 = vmatmul.bf16.gmra.mxu0 %v2132
    %v2383 = vpop.f32.mrf.mxu0
    %v2384 = vadd.f32 %v2335, %v2383
    %v2385 = vpop.f32.mrf.mxu0
    %v2386 = vadd.f32 %v2337, %v2385
    %2387 = vmatmul.bf16.gmra.mxu0 %v2135
    %v2388 = vpop.f32.mrf.mxu0
    %v2389 = vadd.f32 %v2340, %v2388
    %v2390 = vpop.f32.mrf.mxu0
    %v2391 = vadd.f32 %v2342, %v2390
    %2392 = vmatmul.bf16.gmra.mxu0 %v2138
    %v2393 = vpop.f32.mrf.mxu0
    %v2394 = vadd.f32 %v2345, %v2393
    %v2395 = vpop.f32.mrf.mxu0
    %v2396 = vadd.f32 %v2347, %v2395
    %2397 = vmatmul.bf16.gmra.mxu0 %v2141
    %v2398 = vpop.f32.mrf.mxu0
    %v2399 = vadd.f32 %v2350, %v2398
    %v2400 = vpop.f32.mrf.mxu0
    %v2401 = vadd.f32 %v2352, %v2400
    %2402 = vmatmul.bf16.gmra.mxu0 %v2144
    %v2403 = vpop.f32.mrf.mxu0
    %v2404 = vadd.f32 %v2355, %v2403
    %v2405 = vpop.f32.mrf.mxu0
    %v2406 = vadd.f32 %v2357, %v2405
    %2407 = vmatmul.bf16.gmra.mxu0 %v2147
    %v2408 = vpop.f32.mrf.mxu0
    %v2409 = vadd.f32 %v2360, %v2408
    %v2410 = vpop.f32.mrf.mxu0
    %v2411 = vadd.f32 %v2362, %v2410
    %2412 = vmatmul.bf16.gmra.mxu0 %v2150
    %v2413 = vpop.f32.mrf.mxu0
    %v2414 = vadd.f32 %v2365, %v2413
    %v2415 = vpop.f32.mrf.mxu0
    %v2416 = vadd.f32 %v2367, %v2415
    %2417 = vdwg.mxu0
    %2418 = vmatpush.bf16.msra.mxu0 0
    %2419 = vmatpush.bf16.msra.mxu0 0
    %2420 = vmatpush.bf16.msra.mxu0 0
    %2421 = vmatpush.bf16.msra.mxu0 0
    %2422 = vmatpush.bf16.msra.mxu0 0
    %2423 = vmatpush.bf16.msra.mxu0 0
    %2424 = vmatpush.bf16.msra.mxu0 %v2277
    %2425 = vmatpush.bf16.msra.mxu0 %v2276
    %2426 = vmatmul.bf16.gmra.mxu0 %v2297
    %v2427 = vpop.f32.mrf.mxu0
    %v2428 = vadd.f32 %v2379, %v2427
    %v2429 = vpop.f32.mrf.mxu0
    %v2430 = vadd.f32 %v2381, %v2429
    %2431 = vmatmul.bf16.gmra.mxu0 %v2300
    %v2432 = vpop.f32.mrf.mxu0
    %v2433 = vadd.f32 %v2384, %v2432
    %v2434 = vpop.f32.mrf.mxu0
    %v2435 = vadd.f32 %v2386, %v2434
    %2436 = vmatmul.bf16.gmra.mxu0 %v2303
    %v2437 = vpop.f32.mrf.mxu0
    %v2438 = vadd.f32 %v2389, %v2437
    %v2439 = vpop.f32.mrf.mxu0
    %v2440 = vadd.f32 %v2391, %v2439
    %2441 = vmatmul.bf16.gmra.mxu0 %v2306
    %v2442 = vpop.f32.mrf.mxu0
    %v2443 = vadd.f32 %v2394, %v2442
    %v2444 = vpop.f32.mrf.mxu0
    %v2445 = vadd.f32 %v2396, %v2444
    %2446 = vmatmul.bf16.gmra.mxu0 %v2309
    %v2447 = vpop.f32.mrf.mxu0
    %v2448 = vadd.f32 %v2399, %v2447
    %v2449 = vpop.f32.mrf.mxu0
    %v2450 = vadd.f32 %v2401, %v2449
    %2451 = vmatmul.bf16.gmra.mxu0 %v2312
    %v2452 = vpop.f32.mrf.mxu0
    %v2453 = vadd.f32 %v2404, %v2452
    %v2454 = vpop.f32.mrf.mxu0
    %v2455 = vadd.f32 %v2406, %v2454
    %2456 = vmatmul.bf16.gmra.mxu0 %v2315
    %v2457 = vpop.f32.mrf.mxu0
    %v2458 = vadd.f32 %v2409, %v2457
    %v2459 = vpop.f32.mrf.mxu0
    %v2460 = vadd.f32 %v2411, %v2459
    %2461 = vmatmul.bf16.gmra.mxu0 %v2318
    %v2462 = vpop.f32.mrf.mxu0
    %v2463 = vadd.f32 %v2414, %v2462
    %v2464 = vpop.f32.mrf.mxu0
    %v2465 = vadd.f32 %v2416, %v2464
    %2466 = vdwg.mxu0
    %v2467 = vld [vmem:[%s5] sm:$0x1]
    %v2468 = vld [vmem:[%s6] sm:$0x1]
    %v2469 = vsel %vm210, %v2428, 0.0
    %v2470 = vsel %vm210, %v2430, 0.0
    %v2471 = vadd.f32 %v2469, %v2470
    %v2472 = vsel %vm210, %v2433, 0.0
    %v2473 = vadd.f32 %v2471, %v2472
    %v2474 = vsel %vm210, %v2435, 0.0
    %v2475 = vadd.f32 %v2473, %v2474
    %v2476 = vsel %vm210, %v2438, 0.0
    %v2477 = vadd.f32 %v2475, %v2476
    %v2478 = vsel %vm210, %v2440, 0.0
    %v2479 = vadd.f32 %v2477, %v2478
    %v2480 = vsel %vm210, %v2443, 0.0
    %v2481 = vadd.f32 %v2479, %v2480
    %v2482 = vsel %vm210, %v2445, 0.0
    %v2483 = vadd.f32 %v2481, %v2482
    %v2484 = vsel %vm210, %v2448, 0.0
    %v2485 = vadd.f32 %v2483, %v2484
    %v2486 = vsel %vm210, %v2450, 0.0
    %v2487 = vadd.f32 %v2485, %v2486
    %v2488 = vsel %vm210, %v2453, 0.0
    %v2489 = vadd.f32 %v2487, %v2488
    %v2490 = vsel %vm210, %v2455, 0.0
    %v2491 = vadd.f32 %v2489, %v2490
    %v2492 = vsel %vm210, %v2458, 0.0
    %v2493 = vadd.f32 %v2491, %v2492
    %v2494 = vsel %vm210, %v2460, 0.0
    %v2495 = vadd.f32 %v2493, %v2494
    %v2496 = vsel %vm210, %v2463, 0.0
    %v2497 = vadd.f32 %v2495, %v2496
    %v2498 = vsel %vm210, %v2465, 0.0
    %v2499 = vadd.f32 %v2497, %v2498
    %v2500 = vrot.slane %v2499, 4
    %v2501 = vadd.f32 %v2499, %v2500
    %v2502 = vrot.slane %v2501, 2
    %v2503 = vadd.f32 %v2501, %v2502
    %v2504 = vrot.slane %v2503, 1
    %v2505 = vadd.f32 %v2503, %v2504
    %v2506 = vmul.f32 %v2428, %v2428
    %v2507 = vmul.f32 %v2430, %v2430
    %v2508 = vmul.f32 %v2433, %v2433
    %v2509 = vmul.f32 %v2435, %v2435
    %v2510 = vmul.f32 %v2438, %v2438
    %v2511 = vmul.f32 %v2440, %v2440
    %v2512 = vmul.f32 %v2443, %v2443
    %v2513 = vmul.f32 %v2445, %v2445
    %v2514 = vmul.f32 %v2448, %v2448
    %v2515 = vmul.f32 %v2450, %v2450
    %v2516 = vmul.f32 %v2453, %v2453
    %v2517 = vmul.f32 %v2455, %v2455
    %v2518 = vmul.f32 %v2458, %v2458
    %v2519 = vmul.f32 %v2460, %v2460
    %v2520 = vmul.f32 %v2463, %v2463
    %v2521 = vmul.f32 %v2465, %v2465
    %v2522 = vsel %vm210, %v2506, 0.0
    %v2523 = vsel %vm210, %v2507, 0.0
    %v2524 = vadd.f32 %v2522, %v2523
    %v2525 = vsel %vm210, %v2508, 0.0
    %v2526 = vadd.f32 %v2524, %v2525
    %v2527 = vsel %vm210, %v2509, 0.0
    %v2528 = vadd.f32 %v2526, %v2527
    %v2529 = vsel %vm210, %v2510, 0.0
    %v2530 = vadd.f32 %v2528, %v2529
    %v2531 = vsel %vm210, %v2511, 0.0
    %v2532 = vadd.f32 %v2530, %v2531
    %v2533 = vsel %vm210, %v2512, 0.0
    %v2534 = vadd.f32 %v2532, %v2533
    %v2535 = vsel %vm210, %v2513, 0.0
    %v2536 = vadd.f32 %v2534, %v2535
    %v2537 = vsel %vm210, %v2514, 0.0
    %v2538 = vadd.f32 %v2536, %v2537
    %v2539 = vsel %vm210, %v2515, 0.0
    %v2540 = vadd.f32 %v2538, %v2539
    %v2541 = vsel %vm210, %v2516, 0.0
    %v2542 = vadd.f32 %v2540, %v2541
    %v2543 = vsel %vm210, %v2517, 0.0
    %v2544 = vadd.f32 %v2542, %v2543
    %v2545 = vsel %vm210, %v2518, 0.0
    %v2546 = vadd.f32 %v2544, %v2545
    %v2547 = vsel %vm210, %v2519, 0.0
    %v2548 = vadd.f32 %v2546, %v2547
    %v2549 = vsel %vm210, %v2520, 0.0
    %v2550 = vadd.f32 %v2548, %v2549
    %v2551 = vsel %vm210, %v2521, 0.0
    %v2552 = vadd.f32 %v2550, %v2551
    %v2553 = vrot.slane %v2552, 4
    %v2554 = vadd.f32 %v2552, %v2553
    %v2555 = vrot.slane %v2554, 2
    %v2556 = vadd.f32 %v2554, %v2555
    %v2557 = vrot.slane %v2556, 1
    %v2558 = vadd.f32 %v2556, %v2557
    %v2559 = vmul.f32 %v2505, 0.0078125
    %v2560 = vmul.f32 %v2558, 0.0078125
    %v2561 = vmul.f32 %v2559, %v2559
    %v2562 = vsub.f32 %v2560, %v2561
    %v2563 = vadd.f32 %v2562, 1e-05
    %v2564 = vrsqrt.pop %v2563
    %v2565 = vmul.f32 %v2564, %v2563
    %v2566 = vmul.f32 %v2565, %v2564
    %v2567 = vmul.f32 0.5, %v2566
    %v2568 = vsub.f32 1.5, %v2567
    %v2569 = vmul.f32 %v2564, %v2568
    %vm2570 = vweird.f32 %v2563
    %vm2571 = vweird.f32 %v2564
    %vm2572 = vmor %vm2570, %vm2571
    %v2573 = vsel %vm2572, %v2564, %v2569
    %v2574 = vmul.f32 %v2467, %v2573
    %v2575 = vmul.f32 %v2559, %v2574
    %v2576 = vsub.f32 %v2468, %v2575
    %v2578 = vperm.slane %v2574, 0
    %v2580 = vmul.f32 %v2428, %v2578
    %v2581 = vmul.f32 %v2430, %v2578
    %v2582 = vmul.f32 %v2433, %v2578
    %v2583 = vmul.f32 %v2435, %v2578
    %v2584 = vmul.f32 %v2438, %v2578
    %v2585 = vmul.f32 %v2440, %v2578
    %v2586 = vmul.f32 %v2443, %v2578
    %v2587 = vmul.f32 %v2445, %v2578
    %v2588 = vmul.f32 %v2448, %v2578
    %v2589 = vmul.f32 %v2450, %v2578
    %v2590 = vmul.f32 %v2453, %v2578
    %v2591 = vmul.f32 %v2455, %v2578
    %v2592 = vmul.f32 %v2458, %v2578
    %v2593 = vmul.f32 %v2460, %v2578
    %v2594 = vmul.f32 %v2463, %v2578
    %v2595 = vmul.f32 %v2465, %v2578
    %v2597 = vperm.slane %v2576, 0
    %v2599 = vadd.f32 %v2580, %v2597
    %v2600 = vadd.f32 %v2581, %v2597
    %v2601 = vadd.f32 %v2582, %v2597
    %v2602 = vadd.f32 %v2583, %v2597
    %v2603 = vadd.f32 %v2584, %v2597
    %v2604 = vadd.f32 %v2585, %v2597
    %v2605 = vadd.f32 %v2586, %v2597
    %v2606 = vadd.f32 %v2587, %v2597
    %v2607 = vadd.f32 %v2588, %v2597
    %v2608 = vadd.f32 %v2589, %v2597
    %v2609 = vadd.f32 %v2590, %v2597
    %v2610 = vadd.f32 %v2591, %v2597
    %v2611 = vadd.f32 %v2592, %v2597
    %v2612 = vadd.f32 %v2593, %v2597
    %v2613 = vadd.f32 %v2594, %v2597
    %v2614 = vadd.f32 %v2595, %v2597
    %v2615 = vmax.f32 %v2599, 0.0
    %v2616 = vmax.f32 %v2600, 0.0
    %v2617 = vmax.f32 %v2601, 0.0
    %v2618 = vmax.f32 %v2602, 0.0
    %v2619 = vmax.f32 %v2603, 0.0
    %v2620 = vmax.f32 %v2604, 0.0
    %v2621 = vmax.f32 %v2605, 0.0
    %v2622 = vmax.f32 %v2606, 0.0
    %v2623 = vmax.f32 %v2607, 0.0
    %v2624 = vmax.f32 %v2608, 0.0
    %v2625 = vmax.f32 %v2609, 0.0
    %v2626 = vmax.f32 %v2610, 0.0
    %v2627 = vmax.f32 %v2611, 0.0
    %v2628 = vmax.f32 %v2612, 0.0
    %v2629 = vmax.f32 %v2613, 0.0
    %v2630 = vmax.f32 %v2614, 0.0
    %v2631 = vpack.c.bf16 %v2616, %v2615
    %v2632 = vpack.c.bf16 %v2618, %v2617
    %v2633 = vpack.c.bf16 %v2620, %v2619
    %v2634 = vpack.c.bf16 %v2622, %v2621
    %v2635 = vpack.c.bf16 %v2624, %v2623
    %v2636 = vpack.c.bf16 %v2626, %v2625
    %v2637 = vpack.c.bf16 %v2628, %v2627
    %v2638 = vpack.c.bf16 %v2630, %v2629
    %v2639 = vld [vmem:[%s7] sm:$0xf]
    %v2640 = vld [vmem:[%s7 + $0x4] sm:$0xf]
    %v2641 = vld [vmem:[%s7 + $0x8] sm:$0xf]
    %v2642 = vld [vmem:[%s7 + $0xc] sm:$0xf]
    %v2647 = vunpack.c.l.b16 %v2639
    %v2648 = vunpack.c.l.b16 %v2640
    %v2649 = vunpack.c.l.b16 %v2641
    %v2650 = vunpack.c.l.b16 %v2642
    %v2651 = vpack.c.b16 %v2648, %v2647
    %v2652 = vpack.c.b16 %v2650, %v2649
    %v2656 = vsel %vm210, %v2631, 0
    %v2659 = vsel %vm210, %v2632, 0
    %v2662 = vsel %vm210, %v2633, 0
    %v2665 = vsel %vm210, %v2634, 0
    %v2668 = vsel %vm210, %v2635, 0
    %v2671 = vsel %vm210, %v2636, 0
    %v2674 = vsel %vm210, %v2637, 0
    %v2677 = vsel %vm210, %v2638, 0
    %2679 = vmatpush.bf16.msra.mxu0 0
    %2680 = vmatpush.bf16.msra.mxu0 0
    %2681 = vmatpush.bf16.msra.mxu0 0
    %2682 = vmatpush.bf16.msra.mxu0 0
    %2683 = vmatpush.bf16.msra.mxu0 0
    %2684 = vmatpush.bf16.msra.mxu0 0
    %2685 = vmatpush.bf16.msra.mxu0 %v2652
    %2686 = vmatpush.bf16.msra.mxu0 %v2651
    %2687 = vmatmul.bf16.gmra.mxu0 %v2656
    %v2688 = vpop.f32.mrf.mxu0
    %v2689 = vadd.f32 0.0, %v2688
    %v2690 = vpop.f32.mrf.mxu0
    %v2691 = vadd.f32 0.0, %v2690
    %2692 = vmatmul.bf16.gmra.mxu0 %v2659
    %v2693 = vpop.f32.mrf.mxu0
    %v2694 = vadd.f32 0.0, %v2693
    %v2695 = vpop.f32.mrf.mxu0
    %v2696 = vadd.f32 0.0, %v2695
    %2697 = vmatmul.bf16.gmra.mxu0 %v2662
    %v2698 = vpop.f32.mrf.mxu0
    %v2699 = vadd.f32 0.0, %v2698
    %v2700 = vpop.f32.mrf.mxu0
    %v2701 = vadd.f32 0.0, %v2700
    %2702 = vmatmul.bf16.gmra.mxu0 %v2665
    %v2703 = vpop.f32.mrf.mxu0
    %v2704 = vadd.f32 0.0, %v2703
    %v2705 = vpop.f32.mrf.mxu0
    %v2706 = vadd.f32 0.0, %v2705
    %2707 = vmatmul.bf16.gmra.mxu0 %v2668
    %v2708 = vpop.f32.mrf.mxu0
    %v2709 = vadd.f32 0.0, %v2708
    %v2710 = vpop.f32.mrf.mxu0
    %v2711 = vadd.f32 0.0, %v2710
    %2712 = vmatmul.bf16.gmra.mxu0 %v2671
    %v2713 = vpop.f32.mrf.mxu0
    %v2714 = vadd.f32 0.0, %v2713
    %v2715 = vpop.f32.mrf.mxu0
    %v2716 = vadd.f32 0.0, %v2715
    %2717 = vmatmul.bf16.gmra.mxu0 %v2674
    %v2718 = vpop.f32.mrf.mxu0
    %v2719 = vadd.f32 0.0, %v2718
    %v2720 = vpop.f32.mrf.mxu0
    %v2721 = vadd.f32 0.0, %v2720
    %2722 = vmatmul.bf16.gmra.mxu0 %v2677
    %v2723 = vpop.f32.mrf.mxu0
    %v2724 = vadd.f32 0.0, %v2723
    %v2725 = vpop.f32.mrf.mxu0
    %v2726 = vadd.f32 0.0, %v2725
    %2727 = vdwg.mxu0
    %v2728 = vld [vmem:[%s8] sm:$0x1]
    %v2729 = vld [vmem:[%s9] sm:$0x1]
    %v2730 = vadd.f32 %v2689, %v2691
    %v2731 = vadd.f32 %v2730, %v2694
    %v2732 = vadd.f32 %v2731, %v2696
    %v2733 = vadd.f32 %v2732, %v2699
    %v2734 = vadd.f32 %v2733, %v2701
    %v2735 = vadd.f32 %v2734, %v2704
    %v2736 = vadd.f32 %v2735, %v2706
    %v2737 = vadd.f32 %v2736, %v2709
    %v2738 = vadd.f32 %v2737, %v2711
    %v2739 = vadd.f32 %v2738, %v2714
    %v2740 = vadd.f32 %v2739, %v2716
    %v2741 = vadd.f32 %v2740, %v2719
    %v2742 = vadd.f32 %v2741, %v2721
    %v2743 = vadd.f32 %v2742, %v2724
    %v2744 = vadd.f32 %v2743, %v2726
    %v2745 = vrot.slane %v2744, 4
    %v2746 = vadd.f32 %v2744, %v2745
    %v2747 = vrot.slane %v2746, 2
    %v2748 = vadd.f32 %v2746, %v2747
    %v2749 = vrot.slane %v2748, 1
    %v2750 = vadd.f32 %v2748, %v2749
    %v2751 = vmul.f32 %v2689, %v2689
    %v2752 = vmul.f32 %v2691, %v2691
    %v2753 = vmul.f32 %v2694, %v2694
    %v2754 = vmul.f32 %v2696, %v2696
    %v2755 = vmul.f32 %v2699, %v2699
    %v2756 = vmul.f32 %v2701, %v2701
    %v2757 = vmul.f32 %v2704, %v2704
    %v2758 = vmul.f32 %v2706, %v2706
    %v2759 = vmul.f32 %v2709, %v2709
    %v2760 = vmul.f32 %v2711, %v2711
    %v2761 = vmul.f32 %v2714, %v2714
    %v2762 = vmul.f32 %v2716, %v2716
    %v2763 = vmul.f32 %v2719, %v2719
    %v2764 = vmul.f32 %v2721, %v2721
    %v2765 = vmul.f32 %v2724, %v2724
    %v2766 = vmul.f32 %v2726, %v2726
    %v2767 = vadd.f32 %v2751, %v2752
    %v2768 = vadd.f32 %v2767, %v2753
    %v2769 = vadd.f32 %v2768, %v2754
    %v2770 = vadd.f32 %v2769, %v2755
    %v2771 = vadd.f32 %v2770, %v2756
    %v2772 = vadd.f32 %v2771, %v2757
    %v2773 = vadd.f32 %v2772, %v2758
    %v2774 = vadd.f32 %v2773, %v2759
    %v2775 = vadd.f32 %v2774, %v2760
    %v2776 = vadd.f32 %v2775, %v2761
    %v2777 = vadd.f32 %v2776, %v2762
    %v2778 = vadd.f32 %v2777, %v2763
    %v2779 = vadd.f32 %v2778, %v2764
    %v2780 = vadd.f32 %v2779, %v2765
    %v2781 = vadd.f32 %v2780, %v2766
    %v2782 = vrot.slane %v2781, 4
    %v2783 = vadd.f32 %v2781, %v2782
    %v2784 = vrot.slane %v2783, 2
    %v2785 = vadd.f32 %v2783, %v2784
    %v2786 = vrot.slane %v2785, 1
    %v2787 = vadd.f32 %v2785, %v2786
    %v2788 = vmul.f32 %v2750, 0.0078125
    %v2789 = vmul.f32 %v2787, 0.0078125
    %v2790 = vmul.f32 %v2788, %v2788
    %v2791 = vsub.f32 %v2789, %v2790
    %v2792 = vadd.f32 %v2791, 1e-05
    %v2793 = vrsqrt.pop %v2792
    %v2794 = vmul.f32 %v2793, %v2792
    %v2795 = vmul.f32 %v2794, %v2793
    %v2796 = vmul.f32 0.5, %v2795
    %v2797 = vsub.f32 1.5, %v2796
    %v2798 = vmul.f32 %v2793, %v2797
    %vm2799 = vweird.f32 %v2792
    %vm2800 = vweird.f32 %v2793
    %vm2801 = vmor %vm2799, %vm2800
    %v2802 = vsel %vm2801, %v2793, %v2798
    %v2803 = vmul.f32 %v2728, %v2802
    %v2804 = vmul.f32 %v2788, %v2803
    %v2805 = vsub.f32 %v2729, %v2804
    %v2807 = vperm.slane %v2803, 0
    %v2809 = vmul.f32 %v2689, %v2807
    %v2810 = vmul.f32 %v2691, %v2807
    %v2811 = vmul.f32 %v2694, %v2807
    %v2812 = vmul.f32 %v2696, %v2807
    %v2813 = vmul.f32 %v2699, %v2807
    %v2814 = vmul.f32 %v2701, %v2807
    %v2815 = vmul.f32 %v2704, %v2807
    %v2816 = vmul.f32 %v2706, %v2807
    %v2817 = vmul.f32 %v2709, %v2807
    %v2818 = vmul.f32 %v2711, %v2807
    %v2819 = vmul.f32 %v2714, %v2807
    %v2820 = vmul.f32 %v2716, %v2807
    %v2821 = vmul.f32 %v2719, %v2807
    %v2822 = vmul.f32 %v2721, %v2807
    %v2823 = vmul.f32 %v2724, %v2807
    %v2824 = vmul.f32 %v2726, %v2807
    %v2826 = vperm.slane %v2805, 0
    %v2828 = vadd.f32 %v2809, %v2826
    %v2829 = vadd.f32 %v2810, %v2826
    %v2830 = vadd.f32 %v2811, %v2826
    %v2831 = vadd.f32 %v2812, %v2826
    %v2832 = vadd.f32 %v2813, %v2826
    %v2833 = vadd.f32 %v2814, %v2826
    %v2834 = vadd.f32 %v2815, %v2826
    %v2835 = vadd.f32 %v2816, %v2826
    %v2836 = vadd.f32 %v2817, %v2826
    %v2837 = vadd.f32 %v2818, %v2826
    %v2838 = vadd.f32 %v2819, %v2826
    %v2839 = vadd.f32 %v2820, %v2826
    %v2840 = vadd.f32 %v2821, %v2826
    %v2841 = vadd.f32 %v2822, %v2826
    %v2842 = vadd.f32 %v2823, %v2826
    %v2843 = vadd.f32 %v2824, %v2826
    %v2844 = vld [vmem:[%s10] sm:$0xf]
    %v2845 = vld [vmem:[%s10 + $0x4] sm:$0xf]
    %v2846 = vld [vmem:[%s10 + $0x8] sm:$0xf]
    %v2847 = vld [vmem:[%s10 + $0xc] sm:$0xf]
    %v2848 = vld [vmem:[%s10 + $0x10] sm:$0xf]
    %v2849 = vld [vmem:[%s10 + $0x14] sm:$0xf]
    %v2850 = vld [vmem:[%s10 + $0x18] sm:$0xf]
    %v2851 = vld [vmem:[%s10 + $0x1c] sm:$0xf]
    %v2860 = vunpack.c.l.b16 %v2844
    %v2861 = vunpack.c.l.b16 %v2845
    %v2862 = vunpack.c.l.b16 %v2846
    %v2863 = vunpack.c.l.b16 %v2847
    %v2864 = vunpack.c.l.b16 %v2848
    %v2865 = vunpack.c.l.b16 %v2849
    %v2866 = vunpack.c.l.b16 %v2850
    %v2867 = vunpack.c.l.b16 %v2851
    %v2868 = vpack.c.b16 %v2861, %v2860
    %v2869 = vpack.c.b16 %v2863, %v2862
    %v2870 = vpack.c.b16 %v2865, %v2864
    %v2871 = vpack.c.b16 %v2867, %v2866
    %2876 = vmatpush.bf16.msra.mxu0 0
    %2877 = vmatpush.bf16.msra.mxu0 0
    %2878 = vmatpush.bf16.msra.mxu0 0
    %2879 = vmatpush.bf16.msra.mxu0 0
    %2880 = vmatpush.bf16.msra.mxu0 %v2871
    %2881 = vmatpush.bf16.msra.mxu0 %v2870
    %2882 = vmatpush.bf16.msra.mxu0 %v2869
    %2883 = vmatpush.bf16.msra.mxu0 %v2868
    %2884 = vmatmul.bf16.gmra.mxu0 %v136
    %v2885 = vpop.f32.mrf.mxu0
    %v2886 = vadd.f32 0.0, %v2885
    %v2887 = vpop.f32.mrf.mxu0
    %v2888 = vadd.f32 0.0, %v2887
    %2889 = vmatmul.bf16.gmra.mxu0 %v139
    %v2890 = vpop.f32.mrf.mxu0
    %v2891 = vadd.f32 0.0, %v2890
    %v2892 = vpop.f32.mrf.mxu0
    %v2893 = vadd.f32 0.0, %v2892
    %2894 = vmatmul.bf16.gmra.mxu0 %v142
    %v2895 = vpop.f32.mrf.mxu0
    %v2896 = vadd.f32 0.0, %v2895
    %v2897 = vpop.f32.mrf.mxu0
    %v2898 = vadd.f32 0.0, %v2897
    %2899 = vmatmul.bf16.gmra.mxu0 %v145
    %v2900 = vpop.f32.mrf.mxu0
    %v2901 = vadd.f32 0.0, %v2900
    %v2902 = vpop.f32.mrf.mxu0
    %v2903 = vadd.f32 0.0, %v2902
    %2904 = vmatmul.bf16.gmra.mxu0 %v148
    %v2905 = vpop.f32.mrf.mxu0
    %v2906 = vadd.f32 0.0, %v2905
    %v2907 = vpop.f32.mrf.mxu0
    %v2908 = vadd.f32 0.0, %v2907
    %2909 = vmatmul.bf16.gmra.mxu0 %v151
    %v2910 = vpop.f32.mrf.mxu0
    %v2911 = vadd.f32 0.0, %v2910
    %v2912 = vpop.f32.mrf.mxu0
    %v2913 = vadd.f32 0.0, %v2912
    %2914 = vmatmul.bf16.gmra.mxu0 %v154
    %v2915 = vpop.f32.mrf.mxu0
    %v2916 = vadd.f32 0.0, %v2915
    %v2917 = vpop.f32.mrf.mxu0
    %v2918 = vadd.f32 0.0, %v2917
    %2919 = vmatmul.bf16.gmra.mxu0 %v157
    %v2920 = vpop.f32.mrf.mxu0
    %v2921 = vadd.f32 0.0, %v2920
    %v2922 = vpop.f32.mrf.mxu0
    %v2923 = vadd.f32 0.0, %v2922
    %2924 = vdwg.mxu0
    %v2925 = vld [vmem:[%s11] sm:$0x1]
    %v2926 = vld [vmem:[%s12] sm:$0x1]
    %v2927 = vadd.f32 %v2886, %v2888
    %v2928 = vadd.f32 %v2927, %v2891
    %v2929 = vadd.f32 %v2928, %v2893
    %v2930 = vadd.f32 %v2929, %v2896
    %v2931 = vadd.f32 %v2930, %v2898
    %v2932 = vadd.f32 %v2931, %v2901
    %v2933 = vadd.f32 %v2932, %v2903
    %v2934 = vadd.f32 %v2933, %v2906
    %v2935 = vadd.f32 %v2934, %v2908
    %v2936 = vadd.f32 %v2935, %v2911
    %v2937 = vadd.f32 %v2936, %v2913
    %v2938 = vadd.f32 %v2937, %v2916
    %v2939 = vadd.f32 %v2938, %v2918
    %v2940 = vadd.f32 %v2939, %v2921
    %v2941 = vadd.f32 %v2940, %v2923
    %v2942 = vrot.slane %v2941, 4
    %v2943 = vadd.f32 %v2941, %v2942
    %v2944 = vrot.slane %v2943, 2
    %v2945 = vadd.f32 %v2943, %v2944
    %v2946 = vrot.slane %v2945, 1
    %v2947 = vadd.f32 %v2945, %v2946
    %v2948 = vmul.f32 %v2886, %v2886
    %v2949 = vmul.f32 %v2888, %v2888
    %v2950 = vmul.f32 %v2891, %v2891
    %v2951 = vmul.f32 %v2893, %v2893
    %v2952 = vmul.f32 %v2896, %v2896
    %v2953 = vmul.f32 %v2898, %v2898
    %v2954 = vmul.f32 %v2901, %v2901
    %v2955 = vmul.f32 %v2903, %v2903
    %v2956 = vmul.f32 %v2906, %v2906
    %v2957 = vmul.f32 %v2908, %v2908
    %v2958 = vmul.f32 %v2911, %v2911
    %v2959 = vmul.f32 %v2913, %v2913
    %v2960 = vmul.f32 %v2916, %v2916
    %v2961 = vmul.f32 %v2918, %v2918
    %v2962 = vmul.f32 %v2921, %v2921
    %v2963 = vmul.f32 %v2923, %v2923
    %v2964 = vadd.f32 %v2948, %v2949
    %v2965 = vadd.f32 %v2964, %v2950
    %v2966 = vadd.f32 %v2965, %v2951
    %v2967 = vadd.f32 %v2966, %v2952
    %v2968 = vadd.f32 %v2967, %v2953
    %v2969 = vadd.f32 %v2968, %v2954
    %v2970 = vadd.f32 %v2969, %v2955
    %v2971 = vadd.f32 %v2970, %v2956
    %v2972 = vadd.f32 %v2971, %v2957
    %v2973 = vadd.f32 %v2972, %v2958
    %v2974 = vadd.f32 %v2973, %v2959
    %v2975 = vadd.f32 %v2974, %v2960
    %v2976 = vadd.f32 %v2975, %v2961
    %v2977 = vadd.f32 %v2976, %v2962
    %v2978 = vadd.f32 %v2977, %v2963
    %v2979 = vrot.slane %v2978, 4
    %v2980 = vadd.f32 %v2978, %v2979
    %v2981 = vrot.slane %v2980, 2
    %v2982 = vadd.f32 %v2980, %v2981
    %v2983 = vrot.slane %v2982, 1
    %v2984 = vadd.f32 %v2982, %v2983
    %v2985 = vmul.f32 %v2947, 0.0078125
    %v2986 = vmul.f32 %v2984, 0.0078125
    %v2987 = vmul.f32 %v2985, %v2985
    %v2988 = vsub.f32 %v2986, %v2987
    %v2989 = vadd.f32 %v2988, 1e-05
    %v2990 = vrsqrt.pop %v2989
    %v2991 = vmul.f32 %v2990, %v2989
    %v2992 = vmul.f32 %v2991, %v2990
    %v2993 = vmul.f32 0.5, %v2992
    %v2994 = vsub.f32 1.5, %v2993
    %v2995 = vmul.f32 %v2990, %v2994
    %vm2996 = vweird.f32 %v2989
    %vm2997 = vweird.f32 %v2990
    %vm2998 = vmor %vm2996, %vm2997
    %v2999 = vsel %vm2998, %v2990, %v2995
    %v3000 = vmul.f32 %v2925, %v2999
    %v3001 = vmul.f32 %v2985, %v3000
    %v3002 = vsub.f32 %v2926, %v3001
    %v3004 = vperm.slane %v3000, 0
    %v3006 = vmul.f32 %v2886, %v3004
    %v3007 = vmul.f32 %v2888, %v3004
    %v3008 = vmul.f32 %v2891, %v3004
    %v3009 = vmul.f32 %v2893, %v3004
    %v3010 = vmul.f32 %v2896, %v3004
    %v3011 = vmul.f32 %v2898, %v3004
    %v3012 = vmul.f32 %v2901, %v3004
    %v3013 = vmul.f32 %v2903, %v3004
    %v3014 = vmul.f32 %v2906, %v3004
    %v3015 = vmul.f32 %v2908, %v3004
    %v3016 = vmul.f32 %v2911, %v3004
    %v3017 = vmul.f32 %v2913, %v3004
    %v3018 = vmul.f32 %v2916, %v3004
    %v3019 = vmul.f32 %v2918, %v3004
    %v3020 = vmul.f32 %v2921, %v3004
    %v3021 = vmul.f32 %v2923, %v3004
    %v3023 = vperm.slane %v3002, 0
    %v3025 = vadd.f32 %v3006, %v3023
    %v3026 = vadd.f32 %v3007, %v3023
    %v3027 = vadd.f32 %v3008, %v3023
    %v3028 = vadd.f32 %v3009, %v3023
    %v3029 = vadd.f32 %v3010, %v3023
    %v3030 = vadd.f32 %v3011, %v3023
    %v3031 = vadd.f32 %v3012, %v3023
    %v3032 = vadd.f32 %v3013, %v3023
    %v3033 = vadd.f32 %v3014, %v3023
    %v3034 = vadd.f32 %v3015, %v3023
    %v3035 = vadd.f32 %v3016, %v3023
    %v3036 = vadd.f32 %v3017, %v3023
    %v3037 = vadd.f32 %v3018, %v3023
    %v3038 = vadd.f32 %v3019, %v3023
    %v3039 = vadd.f32 %v3020, %v3023
    %v3040 = vadd.f32 %v3021, %v3023
    %v3041 = vadd.f32 %v2828, %v3025
    %v3042 = vadd.f32 %v2829, %v3026
    %v3043 = vadd.f32 %v2830, %v3027
    %v3044 = vadd.f32 %v2831, %v3028
    %v3045 = vadd.f32 %v2832, %v3029
    %v3046 = vadd.f32 %v2833, %v3030
    %v3047 = vadd.f32 %v2834, %v3031
    %v3048 = vadd.f32 %v2835, %v3032
    %v3049 = vadd.f32 %v2836, %v3033
    %v3050 = vadd.f32 %v2837, %v3034
    %v3051 = vadd.f32 %v2838, %v3035
    %v3052 = vadd.f32 %v2839, %v3036
    %v3053 = vadd.f32 %v2840, %v3037
    %v3054 = vadd.f32 %v2841, %v3038
    %v3055 = vadd.f32 %v2842, %v3039
    %v3056 = vadd.f32 %v2843, %v3040
    %v3057 = vmax.f32 %v3041, 0.0
    %v3058 = vmax.f32 %v3042, 0.0
    %v3059 = vmax.f32 %v3043, 0.0
    %v3060 = vmax.f32 %v3044, 0.0
    %v3061 = vmax.f32 %v3045, 0.0
    %v3062 = vmax.f32 %v3046, 0.0
    %v3063 = vmax.f32 %v3047, 0.0
    %v3064 = vmax.f32 %v3048, 0.0
    %v3065 = vmax.f32 %v3049, 0.0
    %v3066 = vmax.f32 %v3050, 0.0
    %v3067 = vmax.f32 %v3051, 0.0
    %v3068 = vmax.f32 %v3052, 0.0
    %v3069 = vmax.f32 %v3053, 0.0
    %v3070 = vmax.f32 %v3054, 0.0
    %v3071 = vmax.f32 %v3055, 0.0
    %v3072 = vmax.f32 %v3056, 0.0
    %3073 = vst [vmem:[#allocation3] sm:$0xff] %v3057
    %3074 = vst [vmem:[#allocation3 + $0x8] sm:$0xff] %v3058
    %3075 = vst [vmem:[#allocation3 + $0x10] sm:$0xff] %v3059
    %3076 = vst [vmem:[#allocation3 + $0x18] sm:$0xff] %v3060
    %3077 = vst [vmem:[#allocation3 + $0x20] sm:$0xff] %v3061
    %3078 = vst [vmem:[#allocation3 + $0x28] sm:$0xff] %v3062
    %3079 = vst [vmem:[#allocation3 + $0x30] sm:$0xff] %v3063
    %3080 = vst [vmem:[#allocation3 + $0x38] sm:$0xff] %v3064
    %3081 = vst [vmem:[#allocation3 + $0x40] sm:$0xff] %v3065
    %3082 = vst [vmem:[#allocation3 + $0x48] sm:$0xff] %v3066
    %3083 = vst [vmem:[#allocation3 + $0x50] sm:$0xff] %v3067
    %3084 = vst [vmem:[#allocation3 + $0x58] sm:$0xff] %v3068
    %3085 = vst [vmem:[#allocation3 + $0x60] sm:$0xff] %v3069
    %3086 = vst [vmem:[#allocation3 + $0x68] sm:$0xff] %v3070
    %3087 = vst [vmem:[#allocation3 + $0x70] sm:$0xff] %v3071
    %3088 = vst [vmem:[#allocation3 + $0x78] sm:$0xff] %v3072
    // Predicated region
    $region54: #{tpu_custom_call.1} parent=1 // pred_check
      _
    $region55: #{tpu_custom_call.1} parent=1 // pred_check_branch
      %3090 = sbr.rel (0) target = $region57
    $region56: #{tpu_custom_call.1} parent=1 // pred_region
      %3092 = vsyncadd [#allocation4], 0
      %s3093 = sshll.u32 [#allocation3], 4
      %s3094 = int_to_ptr.vmem [resolvable:$true] %s3093
      %s3095 = sshll.u32 %s13, 4
      %s3096 = int_to_ptr.hbm [resolvable:$true] %s3095
      %3101 = dma.vmem_to_hbm [thread:$0]  %s3094, 2048, %s3096, [#allocation4], 128, 128, 8
    $region57: #{tpu_custom_call.1} parent=1 // pred_fallthru
      _
    // Predicated region
    $region58: #{tpu_custom_call.1} parent=1 // pred_check
      _
    $region59: #{tpu_custom_call.1} parent=1 // pred_check_branch
      %3103 = sbr.rel (0) target = $region61
    $region60: #{tpu_custom_call.1} parent=1 // pred_region
      %3105 = dma.done [#allocation4], 2048
    $region61: #{tpu_custom_call.1} parent=1 // pred_fallthru
      _
    %3106 = vsyncpa [#allocation4], 1

</llo_original>
